<compile_context>
chip_gen: v5e
topology: v5e:2x2
jax: 0.10.0
libtpu: 0.0.40
codegen_flags: <defaults>
</compile_context>

<pallas_src>
import jax
import jax.numpy as jnp
from jax.experimental import pallas as pl
from jax.experimental.pallas import tpu as pltpu

DIMS = [93, 192, 128, 64, 32, 8, 1]
IN_PADS = [128, 256, 128, 128, 128]    # padded fan-in  of layers 1..5
OUT_PADS = [256, 128, 128, 128, 128]   # padded fan-out of layers 1..5


def mlp_kernel(x_ref, w1_ref, w2_ref, w3_ref, w4_ref, w5_ref, w6_ref,
               bpk_ref, out_ref):
    """One batch tile: (bm, 128) bf16 activations -> (1, bm) f32 probabilities.

    w1..w5: per-layer zero-padded bf16 weight slabs (see IN_PADS/OUT_PADS).
    w6_ref: (8, 128) f32, row 0 = layer-6 weights in lanes 0..7, rest 0.
    bpk_ref: (8, 256) f32, rows 0..4 = biases of layers 1..5 (padded lanes 0),
             row 5 lane 0 = layer-6 bias.
    """
    h = x_ref[...]                                              # (bm, 128) bf16
    for i, w_ref in enumerate((w1_ref, w2_ref, w3_ref, w4_ref, w5_ref)):
        y = jnp.dot(h, w_ref[...], preferred_element_type=jnp.float32)
        y = y + bpk_ref[i, :y.shape[-1]]                        # f32 bias row
        h = jnp.maximum(y, 0.0).astype(jnp.bfloat16)            # padded lanes stay 0

    # Layer 6 (8 -> 1) as an NT matmul so the result is lane-dense (batch on
    # lanes): (8,128) . (bm,128)^T -> (8,bm); only row 0 is real.
    y6 = jax.lax.dot_general(w6_ref[...], h.astype(jnp.float32),
                             (((1,), (1,)), ((), ())),
                             preferred_element_type=jnp.float32)   # (8, bm)
    logit = y6[0:1, :] + bpk_ref[5:6, 0:1]                          # (1, bm)
    out_ref[...] = jax.nn.sigmoid(logit)


def pack_params(params):
    """Pack 6 (W, b) pairs (W stored as (in, out)) into padded slabs."""
    ws = []
    bpk = jnp.zeros((8, 256), jnp.float32)
    for i, (w, b) in enumerate(params[:5]):
        fin, fout = w.shape
        slab = jnp.zeros((IN_PADS[i], OUT_PADS[i]), jnp.float32)
        slab = slab.at[:fin, :fout].set(w)          # padded rows/cols stay 0
        ws.append(slab.astype(jnp.bfloat16))
        bpk = bpk.at[i, :fout].set(b.reshape(-1))   # padded bias lanes stay 0
    w6, b6 = params[5]                               # (8, 1), (1, 1)
    w6row = jnp.zeros((8, 128), jnp.float32).at[0, :8].set(w6.reshape(-1))
    bpk = bpk.at[5, 0].set(b6.reshape(-1)[0])
    return ws, w6row, bpk


def binary_classifier_forward(x, ws, w6row, bpk, *, bm=512):
    """x: (B, 93) float32 -> (B, 1) float32 probabilities."""
    B, F = x.shape
    # Tile must be a multiple of 128 lanes (lane-dense output store). For small
    # batches shrink it so the grid has >=2 steps (v7x has 2 TensorCores).
    if B <= bm:
        bm = max(128, ((pl.cdiv(B, 2) + 127) // 128) * 128)
    b_pad = pl.cdiv(B, bm) * bm
    n_tiles = b_pad // bm

    # Pad batch to a tile multiple and features to 128 lanes; cast to bf16.
    xp = jnp.zeros((b_pad, IN_PADS[0]), jnp.bfloat16).at[:B, :F].set(
        x.astype(jnp.bfloat16))

    w1, w2, w3, w4, w5 = ws
    flops = 2 * b_pad * (sum(i * o for i, o in zip(IN_PADS, OUT_PADS)) + 8 * 128)
    bytes_accessed = (xp.size * 2 + sum(int(w.size) for w in ws) * 2
                      + w6row.size * 4 + bpk.size * 4 + b_pad * 4)

    const2 = lambda i: (0, 0)
    out = pl.pallas_call(
        mlp_kernel,
        out_shape=jax.ShapeDtypeStruct((1, b_pad), jnp.float32),
        grid=(n_tiles,),
        in_specs=[
            pl.BlockSpec((bm, IN_PADS[0]), lambda i: (i, 0)),  # activations stream
            pl.BlockSpec(w1.shape, const2),                    # weights VMEM-resident
            pl.BlockSpec(w2.shape, const2),
            pl.BlockSpec(w3.shape, const2),
            pl.BlockSpec(w4.shape, const2),
            pl.BlockSpec(w5.shape, const2),
            pl.BlockSpec(w6row.shape, const2),
            pl.BlockSpec(bpk.shape, const2),
        ],
        out_specs=pl.BlockSpec((1, bm), lambda i: (0, i)),     # lane-dense store
        compiler_params=pltpu.CompilerParams(
            dimension_semantics=("parallel",)),
        cost_estimate=pl.CostEstimate(
            flops=int(flops),
            transcendentals=int(b_pad),
            bytes_accessed=int(bytes_accessed)),
    )(xp, w1, w2, w3, w4, w5, w6row, bpk)

    return out[0, :B][:, None]


def init_params(key):
    """PyTorch nn.Linear-style init; W stored transposed as (in, out)."""
    params = []
    for i in range(len(DIMS) - 1):
        fan_in, fan_out = DIMS[i], DIMS[i + 1]
        key, kw, kb = jax.random.split(key, 3)
        bound = 1.0 / (fan_in ** 0.5)
        w = jax.random.uniform(kw, (fan_in, fan_out), jnp.float32,
                               minval=-bound, maxval=bound)
        b = jax.random.uniform(kb, (1, fan_out), jnp.float32,
                               minval=-bound, maxval=bound)
        params.append((w, b))
    return params


def reference_forward(x, params):
    """Plain-JAX float32 reference matching the PyTorch module semantics."""
    h = x
    for i, (w, b) in enumerate(params):
        h = h @ w + b
        h = jnp.maximum(h, 0.0) if i < len(params) - 1 else jax.nn.sigmoid(h)
    return h


if __name__ == "__main__":
    key = jax.random.PRNGKey(0)
    key, kx = jax.random.split(key)

    batch = 500  # not a multiple of the tile -> exercises pad + slice, 2 grid steps
    x = jax.random.normal(kx, (batch, 93), dtype=jnp.float32)

    params = init_params(key)
    ws, w6row, bpk = pack_params(params)

    out = binary_classifier_forward(x, ws, w6row, bpk)
    out = jax.block_until_ready(out)

    ref = reference_forward(x, params)
    assert out.shape == (batch, 1)
    # bf16 MXU inputs with f32 accumulation -> loosen tolerance vs f32 reference.
    assert jnp.allclose(out, ref, atol=2e-2, rtol=0.0), \
        float(jnp.max(jnp.abs(out - ref)))

    print("KERNEL_OK")
</pallas_src>

<mosaic_0001>
module attributes {stable_mosaic.version = 11 : i64} {
  func.func @mlp_kernel(%arg0: i32, %arg1: memref<256x128xbf16, #tpu.memory_space<vmem>>, %arg2: memref<128x256xbf16, #tpu.memory_space<vmem>>, %arg3: memref<256x128xbf16, #tpu.memory_space<vmem>>, %arg4: memref<128x128xbf16, #tpu.memory_space<vmem>>, %arg5: memref<128x128xbf16, #tpu.memory_space<vmem>>, %arg6: memref<128x128xbf16, #tpu.memory_space<vmem>>, %arg7: memref<8x128xf32, #tpu.memory_space<vmem>>, %arg8: memref<8x256xf32, #tpu.memory_space<vmem>>, %arg9: memref<1x256xf32, #tpu.memory_space<vmem>>) attributes {dimension_semantics = [#tpu.dimension_semantics<parallel>], iteration_bounds = array<i64: 2>, scalar_prefetch = 0 : i64, scratch_operands = 0 : i64, tpu.core_type = #tpu.core_type<tc>, window_params = [{transform_indices = @transform_0, window_bounds = array<i64: 256, 128>}, {pipeline_mode = #tpu.pipeline_mode<synchronous>, transform_indices = @transform_1, window_bounds = array<i64: 128, 256>}, {pipeline_mode = #tpu.pipeline_mode<synchronous>, transform_indices = @transform_2, window_bounds = array<i64: 256, 128>}, {pipeline_mode = #tpu.pipeline_mode<synchronous>, transform_indices = @transform_3, window_bounds = array<i64: 128, 128>}, {pipeline_mode = #tpu.pipeline_mode<synchronous>, transform_indices = @transform_4, window_bounds = array<i64: 128, 128>}, {pipeline_mode = #tpu.pipeline_mode<synchronous>, transform_indices = @transform_5, window_bounds = array<i64: 128, 128>}, {pipeline_mode = #tpu.pipeline_mode<synchronous>, transform_indices = @transform_6, window_bounds = array<i64: 8, 128>}, {pipeline_mode = #tpu.pipeline_mode<synchronous>, transform_indices = @transform_7, window_bounds = array<i64: 8, 256>}, {transform_indices = @transform_8, window_bounds = array<i64: 1, 256>}]} {
    %c0 = arith.constant 0 : index
    %c0_0 = arith.constant 0 : index
    %0 = vector.load %arg1[%c0, %c0_0] : memref<256x128xbf16, #tpu.memory_space<vmem>>, vector<256x128xbf16>
    %c0_1 = arith.constant 0 : index
    %c0_2 = arith.constant 0 : index
    %1 = vector.load %arg2[%c0_1, %c0_2] : memref<128x256xbf16, #tpu.memory_space<vmem>>, vector<128x256xbf16>
    %cst = arith.constant dense<0.000000e+00> : vector<256x256xf32>
    %2 = tpu.matmul %0, %1, %cst {dimension_numbers = #tpu.dot_dimension_numbers<[1], [0], [0], [1], [0, 0, 1, 1], [], []>} : vector<256x128xbf16>, vector<128x256xbf16>, vector<256x256xf32> -> vector<256x256xf32>
    %c0_3 = arith.constant 0 : index
    %c0_4 = arith.constant 0 : index
    %3 = vector.load %arg8[%c0_3, %c0_4] : memref<8x256xf32, #tpu.memory_space<vmem>>, vector<1x256xf32>
    %4 = vector.shape_cast %3 : vector<1x256xf32> to vector<256xf32>
    %5 = vector.shape_cast %4 : vector<256xf32> to vector<1x256xf32>
    %6 = vector.broadcast %5 : vector<1x256xf32> to vector<256x256xf32>
    %7 = arith.addf %2, %6 : vector<256x256xf32>
    %cst_5 = arith.constant 0.000000e+00 : f32
    %8 = vector.broadcast %cst_5 : f32 to vector<256x256xf32>
    %9 = arith.maximumf %7, %8 : vector<256x256xf32>
    %10 = arith.truncf %9 : vector<256x256xf32> to vector<256x256xbf16>
    %c0_6 = arith.constant 0 : index
    %c0_7 = arith.constant 0 : index
    %11 = vector.load %arg3[%c0_6, %c0_7] : memref<256x128xbf16, #tpu.memory_space<vmem>>, vector<256x128xbf16>
    %cst_8 = arith.constant dense<0.000000e+00> : vector<256x128xf32>
    %12 = tpu.matmul %10, %11, %cst_8 {dimension_numbers = #tpu.dot_dimension_numbers<[1], [0], [0], [1], [0, 0, 1, 1], [], []>} : vector<256x256xbf16>, vector<256x128xbf16>, vector<256x128xf32> -> vector<256x128xf32>
    %c1 = arith.constant 1 : index
    %c0_9 = arith.constant 0 : index
    %13 = vector.load %arg8[%c1, %c0_9] : memref<8x256xf32, #tpu.memory_space<vmem>>, vector<1x128xf32>
    %14 = vector.shape_cast %13 : vector<1x128xf32> to vector<128xf32>
    %15 = vector.shape_cast %14 : vector<128xf32> to vector<1x128xf32>
    %16 = vector.broadcast %15 : vector<1x128xf32> to vector<256x128xf32>
    %17 = arith.addf %12, %16 : vector<256x128xf32>
    %cst_10 = arith.constant 0.000000e+00 : f32
    %18 = vector.broadcast %cst_10 : f32 to vector<256x128xf32>
    %19 = arith.maximumf %17, %18 : vector<256x128xf32>
    %20 = arith.truncf %19 : vector<256x128xf32> to vector<256x128xbf16>
    %c0_11 = arith.constant 0 : index
    %c0_12 = arith.constant 0 : index
    %21 = vector.load %arg4[%c0_11, %c0_12] : memref<128x128xbf16, #tpu.memory_space<vmem>>, vector<128x128xbf16>
    %cst_13 = arith.constant dense<0.000000e+00> : vector<256x128xf32>
    %22 = tpu.matmul %20, %21, %cst_13 {dimension_numbers = #tpu.dot_dimension_numbers<[1], [0], [0], [1], [0, 0, 1, 1], [], []>} : vector<256x128xbf16>, vector<128x128xbf16>, vector<256x128xf32> -> vector<256x128xf32>
    %c2 = arith.constant 2 : index
    %c0_14 = arith.constant 0 : index
    %23 = vector.load %arg8[%c2, %c0_14] : memref<8x256xf32, #tpu.memory_space<vmem>>, vector<1x128xf32>
    %24 = vector.shape_cast %23 : vector<1x128xf32> to vector<128xf32>
    %25 = vector.shape_cast %24 : vector<128xf32> to vector<1x128xf32>
    %26 = vector.broadcast %25 : vector<1x128xf32> to vector<256x128xf32>
    %27 = arith.addf %22, %26 : vector<256x128xf32>
    %cst_15 = arith.constant 0.000000e+00 : f32
    %28 = vector.broadcast %cst_15 : f32 to vector<256x128xf32>
    %29 = arith.maximumf %27, %28 : vector<256x128xf32>
    %30 = arith.truncf %29 : vector<256x128xf32> to vector<256x128xbf16>
    %c0_16 = arith.constant 0 : index
    %c0_17 = arith.constant 0 : index
    %31 = vector.load %arg5[%c0_16, %c0_17] : memref<128x128xbf16, #tpu.memory_space<vmem>>, vector<128x128xbf16>
    %cst_18 = arith.constant dense<0.000000e+00> : vector<256x128xf32>
    %32 = tpu.matmul %30, %31, %cst_18 {dimension_numbers = #tpu.dot_dimension_numbers<[1], [0], [0], [1], [0, 0, 1, 1], [], []>} : vector<256x128xbf16>, vector<128x128xbf16>, vector<256x128xf32> -> vector<256x128xf32>
    %c3 = arith.constant 3 : index
    %c0_19 = arith.constant 0 : index
    %33 = vector.load %arg8[%c3, %c0_19] : memref<8x256xf32, #tpu.memory_space<vmem>>, vector<1x128xf32>
    %34 = vector.shape_cast %33 : vector<1x128xf32> to vector<128xf32>
    %35 = vector.shape_cast %34 : vector<128xf32> to vector<1x128xf32>
    %36 = vector.broadcast %35 : vector<1x128xf32> to vector<256x128xf32>
    %37 = arith.addf %32, %36 : vector<256x128xf32>
    %cst_20 = arith.constant 0.000000e+00 : f32
    %38 = vector.broadcast %cst_20 : f32 to vector<256x128xf32>
    %39 = arith.maximumf %37, %38 : vector<256x128xf32>
    %40 = arith.truncf %39 : vector<256x128xf32> to vector<256x128xbf16>
    %c0_21 = arith.constant 0 : index
    %c0_22 = arith.constant 0 : index
    %41 = vector.load %arg6[%c0_21, %c0_22] : memref<128x128xbf16, #tpu.memory_space<vmem>>, vector<128x128xbf16>
    %cst_23 = arith.constant dense<0.000000e+00> : vector<256x128xf32>
    %42 = tpu.matmul %40, %41, %cst_23 {dimension_numbers = #tpu.dot_dimension_numbers<[1], [0], [0], [1], [0, 0, 1, 1], [], []>} : vector<256x128xbf16>, vector<128x128xbf16>, vector<256x128xf32> -> vector<256x128xf32>
    %c4 = arith.constant 4 : index
    %c0_24 = arith.constant 0 : index
    %43 = vector.load %arg8[%c4, %c0_24] : memref<8x256xf32, #tpu.memory_space<vmem>>, vector<1x128xf32>
    %44 = vector.shape_cast %43 : vector<1x128xf32> to vector<128xf32>
    %45 = vector.shape_cast %44 : vector<128xf32> to vector<1x128xf32>
    %46 = vector.broadcast %45 : vector<1x128xf32> to vector<256x128xf32>
    %47 = arith.addf %42, %46 : vector<256x128xf32>
    %cst_25 = arith.constant 0.000000e+00 : f32
    %48 = vector.broadcast %cst_25 : f32 to vector<256x128xf32>
    %49 = arith.maximumf %47, %48 : vector<256x128xf32>
    %50 = arith.truncf %49 : vector<256x128xf32> to vector<256x128xbf16>
    %c0_26 = arith.constant 0 : index
    %c0_27 = arith.constant 0 : index
    %51 = vector.load %arg7[%c0_26, %c0_27] : memref<8x128xf32, #tpu.memory_space<vmem>>, vector<8x128xf32>
    %52 = arith.extf %50 : vector<256x128xbf16> to vector<256x128xf32>
    %cst_28 = arith.constant dense<0.000000e+00> : vector<8x256xf32>
    %53 = tpu.matmul %51, %52, %cst_28 {dimension_numbers = #tpu.dot_dimension_numbers<[1], [1], [0], [0], [0, 0, 1, 0], [], []>} : vector<8x128xf32>, vector<256x128xf32>, vector<8x256xf32> -> vector<8x256xf32>
    %54 = vector.extract_strided_slice %53 {offsets = [0, 0], sizes = [1, 256], strides = [1, 1]} : vector<8x256xf32> to vector<1x256xf32>
    %c5 = arith.constant 5 : index
    %c0_29 = arith.constant 0 : index
    %55 = vector.load %arg8[%c5, %c0_29] : memref<8x256xf32, #tpu.memory_space<vmem>>, vector<1x1xf32>
    %56 = vector.broadcast %55 : vector<1x1xf32> to vector<1x256xf32>
    %57 = arith.addf %54, %56 : vector<1x256xf32>
    %58 = arith.negf %57 : vector<1x256xf32>
    %59 = math.exp %58 : vector<1x256xf32>
    %cst_30 = arith.constant 1.000000e+00 : f32
    %60 = vector.broadcast %cst_30 : f32 to vector<1x256xf32>
    %61 = arith.addf %60, %59 : vector<1x256xf32>
    %62 = arith.divf %60, %61 : vector<1x256xf32>
    %c0_31 = arith.constant 0 : index
    %c0_32 = arith.constant 0 : index
    %63 = vector.load %arg9[%c0_31, %c0_32] : memref<1x256xf32, #tpu.memory_space<vmem>>, vector<1x256xf32>
    tpu.vector_store %arg9[%c0_31, %c0_32], %62 {strides = array<i32>} : memref<1x256xf32, #tpu.memory_space<vmem>>, vector<1x256xf32>,
    return
  }
  func.func @transform_0(%arg0: i32) -> (i32, i32) {
    %c0_i32 = arith.constant 0 : i32
    %c0_i32_0 = arith.constant 0 : i32
    return %arg0, %c0_i32 : i32, i32
  }
  func.func @transform_1(%arg0: i32) -> (i32, i32) {
    %c0_i32 = arith.constant 0 : i32
    %c0_i32_0 = arith.constant 0 : i32
    %c0_i32_1 = arith.constant 0 : i32
    return %c0_i32, %c0_i32_0 : i32, i32
  }
  func.func @transform_2(%arg0: i32) -> (i32, i32) {
    %c0_i32 = arith.constant 0 : i32
    %c0_i32_0 = arith.constant 0 : i32
    %c0_i32_1 = arith.constant 0 : i32
    return %c0_i32, %c0_i32_0 : i32, i32
  }
  func.func @transform_3(%arg0: i32) -> (i32, i32) {
    %c0_i32 = arith.constant 0 : i32
    %c0_i32_0 = arith.constant 0 : i32
    %c0_i32_1 = arith.constant 0 : i32
    return %c0_i32, %c0_i32_0 : i32, i32
  }
  func.func @transform_4(%arg0: i32) -> (i32, i32) {
    %c0_i32 = arith.constant 0 : i32
    %c0_i32_0 = arith.constant 0 : i32
    %c0_i32_1 = arith.constant 0 : i32
    return %c0_i32, %c0_i32_0 : i32, i32
  }
  func.func @transform_5(%arg0: i32) -> (i32, i32) {
    %c0_i32 = arith.constant 0 : i32
    %c0_i32_0 = arith.constant 0 : i32
    %c0_i32_1 = arith.constant 0 : i32
    return %c0_i32, %c0_i32_0 : i32, i32
  }
  func.func @transform_6(%arg0: i32) -> (i32, i32) {
    %c0_i32 = arith.constant 0 : i32
    %c0_i32_0 = arith.constant 0 : i32
    %c0_i32_1 = arith.constant 0 : i32
    return %c0_i32, %c0_i32_0 : i32, i32
  }
  func.func @transform_7(%arg0: i32) -> (i32, i32) {
    %c0_i32 = arith.constant 0 : i32
    %c0_i32_0 = arith.constant 0 : i32
    %c0_i32_1 = arith.constant 0 : i32
    return %c0_i32, %c0_i32_0 : i32, i32
  }
  func.func @transform_8(%arg0: i32) -> (i32, i32) {
    %c0_i32 = arith.constant 0 : i32
    %c0_i32_0 = arith.constant 0 : i32
    return %c0_i32, %arg0 : i32, i32
  }
}

</mosaic_0001>

<llo_original>
// kernel: tpu_custom_call.1
$region0: #{tpu_custom_call.1}
  #allocation0 [shape = 'u32[]', space=smem, size = 0x4, offset = 0x4, fixed_abs, tag = 'smem constant byte address 0x4 - core index']
  #allocation1 [shape = 'u32[72,128]{1,0:T(1,128)}', space=vmem, size = 0x9000, scoped, tag = 'internal scratch']
  %s0 = inlined_call_operand.hbm [shape: bf16[512,128], index: 0, kind: input, shape index: {}]
  %s1 = inlined_call_operand.hbm [shape: bf16[128,256], index: 1, kind: input, shape index: {}]
  %s2 = inlined_call_operand.hbm [shape: bf16[256,128], index: 2, kind: input, shape index: {}]
  %s3 = inlined_call_operand.hbm [shape: bf16[128,128], index: 3, kind: input, shape index: {}]
  %s4 = inlined_call_operand.hbm [shape: bf16[128,128], index: 4, kind: input, shape index: {}]
  %s5 = inlined_call_operand.hbm [shape: bf16[128,128], index: 5, kind: input, shape index: {}]
  %s6 = inlined_call_operand.hbm [shape: f32[8,128], index: 6, kind: input, shape index: {}]
  %s7 = inlined_call_operand.hbm [shape: f32[8,256], index: 7, kind: input, shape index: {}]
  %s8 = inlined_call_operand.hbm [shape: f32[1,512], index: 8, kind: output, shape index: {}]
  %s9 = sld [smem:[#allocation0]]
  $region97: #{tpu_custom_call.1} parent=0
    _
  %s11 = ssub.s32 1, %s9
  %s12 = scalar_select 0, %s11, %s9
  $region1: #{tpu_custom_call.1} parent=0
    #allocation2 [shape = 'u8[131072]{0}', space=vmem, size = 0x20000, scoped, tag = 'input window, operand 0']
    #allocation3 [shape = 's32[2]{0}', space=sflag, size = 0x8, scoped, tag = 'scoped memory for tpu_custom_call.1']
    #allocation4 [shape = 's32[2]{0}', space=sflag, size = 0x8, scoped, tag = 'scoped memory for tpu_custom_call.1']
    #allocation5 [shape = 'u8[65536]{0}', space=vmem, size = 0x10000, scoped, tag = 'input window, operand 1, single buffered']
    #allocation6 [shape = 's32[1]{0}', space=sflag, size = 0x4, scoped, tag = 'scoped memory for tpu_custom_call.1']
    #allocation7 [shape = 'u8[65536]{0}', space=vmem, size = 0x10000, scoped, tag = 'input window, operand 2, single buffered']
    #allocation8 [shape = 'u8[32768]{0}', space=vmem, size = 0x8000, scoped, tag = 'input window, operand 3, single buffered']
    #allocation9 [shape = 's32[1]{0}', space=sflag, size = 0x4, scoped, tag = 'scoped memory for tpu_custom_call.1']
    #allocation10 [shape = 'u8[32768]{0}', space=vmem, size = 0x8000, scoped, tag = 'input window, operand 4, single buffered']
    #allocation11 [shape = 'u8[32768]{0}', space=vmem, size = 0x8000, scoped, tag = 'input window, operand 5, single buffered']
    #allocation12 [shape = 's32[1]{0}', space=sflag, size = 0x4, scoped, tag = 'scoped memory for tpu_custom_call.1']
    #allocation13 [shape = 'u8[4096]{0}', space=vmem, size = 0x1000, scoped, tag = 'input window, operand 6, single buffered']
    #allocation14 [shape = 'u8[8192]{0}', space=vmem, size = 0x2000, scoped, tag = 'input window, operand 7, single buffered']
    #allocation15 [shape = 's32[1]{0}', space=sflag, size = 0x4, scoped, tag = 'scoped memory for tpu_custom_call.1']
    #allocation16 [shape = 'u8[2048]{0}', space=vmem, size = 0x800, scoped, tag = 'output window, operand 0']
    %13 = vsyncpa [#allocation3], 0
    %s14 = scalar_lea.sflag [#allocation3], 1
    %15 = vsyncpa %s14, 0
    %16 = vsyncpa [#allocation6], 0
    %17 = vsyncpa [#allocation9], 0
    %18 = vsyncpa [#allocation12], 0
    %19 = vsyncpa [#allocation15], 0
    %20 = vsyncpa [#allocation4], 0
    %s21 = scalar_lea.sflag [#allocation4], 1
    %22 = vsyncpa %s21, 0
    loop: start=0, step=1, limit=4
    $region2: #{tpu_custom_call.1} parent=1 // loop_pre_header
      _
    $region3: #{tpu_custom_call.1} parent=1 // loop_header
      %s24 = sphi 0, %s28
      %p25 = scmp.ge.s32.totalorder %s24, 4
      %s34 = sphi 0, %s36
      %s37 = sphi 0, %s34
      %s38 = sphi 0, %s37
      %s54 = sphi 0, %s38
      %s58 = sphi 0, %s58
      %s60 = sphi 0, %s58
      %s61 = sphi 0, %s60
      %s75 = sphi 0, %s61
      %s79 = sphi 0, %s79
      %s81 = sphi 0, %s79
      %s82 = sphi 0, %s81
      %s96 = sphi 0, %s82
      %s100 = sphi 0, %s100
      %s102 = sphi 0, %s100
      %s103 = sphi 0, %s102
      %s117 = sphi 0, %s103
      %s121 = sphi 0, %s121
      %s123 = sphi 0, %s121
      %s124 = sphi 0, %s123
      %s138 = sphi 0, %s124
      %s142 = sphi 0, %s142
      %s144 = sphi 0, %s142
      %s145 = sphi 0, %s144
      %s159 = sphi 0, %s145
      %s163 = sphi 0, %s163
      %s165 = sphi 0, %s163
      %s166 = sphi 0, %s165
      %s180 = sphi 0, %s166
      %s184 = sphi 0, %s184
      %s186 = sphi 0, %s184
      %s187 = sphi 0, %s186
      %s201 = sphi 0, %s187
      %s207 = sphi 0, %s209
      %s210 = sphi 0, %s207
      %s211 = sphi 0, %s210
      %s227 = sphi 0, %s211
    $region4: #{tpu_custom_call.1} parent=1 // loop_header_branch
      %27 = sbr.rel (%p25) target = $region8
    $region5: #{tpu_custom_call.1} parent=1 // loop_body
      %s29 = ssub.s32 %s24, 1
      %s30 = ssub.s32 %s24, 2
      %s31 = sadd.s32 %s24, 1
      %s32 = ssub.s32 %s24, %s31
      %p33 = scmp.eq.s32.totalorder %s32, 0
      %s35 = sadd.s32 %s34, 1
      %s36 = scalar_select %p33, %s34, %s35
      %p39 = pneg %p33
      %p40 = scmp.eq.s32.totalorder %s24, 1
      %p41 = por %p39, %p40
      %p42 = scmp.ne.s32.totalorder %s34, %s37
      %p43 = scmp.eq.s32.totalorder %s24, 0
      %p44 = por %p42, %p43
      %p45 = scmp.ne.s32.totalorder %s34, %s37
      %p46 = scmp.eq.s32.totalorder %s29, 1
      %p47 = por %p45, %p46
      %p48 = scmp.ne.s32.totalorder %s37, %s38
      %p49 = scmp.eq.s32.totalorder %s29, 0
      %p50 = por %p48, %p49
      %p51 = scmp.ne.s32.totalorder %s37, %s38
      %p52 = scmp.eq.s32.totalorder %s30, 1
      %p53 = por %p51, %p52
      %p55 = scmp.ne.s32.totalorder %s38, %s54
      %p56 = scmp.eq.s32.totalorder %s30, 0
      %p57 = por %p55, %p56
      %s59 = sadd.s32 %s58, 1
      %p62 = scmp.eq.s32.totalorder %s24, 1
      %p63 = scmp.ne.s32.totalorder %s58, %s60
      %p64 = scmp.eq.s32.totalorder %s24, 0
      %p65 = por %p63, %p64
      %p66 = scmp.ne.s32.totalorder %s58, %s60
      %p67 = scmp.eq.s32.totalorder %s29, 1
      %p68 = por %p66, %p67
      %p69 = scmp.ne.s32.totalorder %s60, %s61
      %p70 = scmp.eq.s32.totalorder %s29, 0
      %p71 = por %p69, %p70
      %p72 = scmp.ne.s32.totalorder %s60, %s61
      %p73 = scmp.eq.s32.totalorder %s30, 1
      %p74 = por %p72, %p73
      %p76 = scmp.ne.s32.totalorder %s61, %s75
      %p77 = scmp.eq.s32.totalorder %s30, 0
      %p78 = por %p76, %p77
      %s80 = sadd.s32 %s79, 1
      %p83 = scmp.eq.s32.totalorder %s24, 1
      %p84 = scmp.ne.s32.totalorder %s79, %s81
      %p85 = scmp.eq.s32.totalorder %s24, 0
      %p86 = por %p84, %p85
      %p87 = scmp.ne.s32.totalorder %s79, %s81
      %p88 = scmp.eq.s32.totalorder %s29, 1
      %p89 = por %p87, %p88
      %p90 = scmp.ne.s32.totalorder %s81, %s82
      %p91 = scmp.eq.s32.totalorder %s29, 0
      %p92 = por %p90, %p91
      %p93 = scmp.ne.s32.totalorder %s81, %s82
      %p94 = scmp.eq.s32.totalorder %s30, 1
      %p95 = por %p93, %p94
      %p97 = scmp.ne.s32.totalorder %s82, %s96
      %p98 = scmp.eq.s32.totalorder %s30, 0
      %p99 = por %p97, %p98
      %s101 = sadd.s32 %s100, 1
      %p104 = scmp.eq.s32.totalorder %s24, 1
      %p105 = scmp.ne.s32.totalorder %s100, %s102
      %p106 = scmp.eq.s32.totalorder %s24, 0
      %p107 = por %p105, %p106
      %p108 = scmp.ne.s32.totalorder %s100, %s102
      %p109 = scmp.eq.s32.totalorder %s29, 1
      %p110 = por %p108, %p109
      %p111 = scmp.ne.s32.totalorder %s102, %s103
      %p112 = scmp.eq.s32.totalorder %s29, 0
      %p113 = por %p111, %p112
      %p114 = scmp.ne.s32.totalorder %s102, %s103
      %p115 = scmp.eq.s32.totalorder %s30, 1
      %p116 = por %p114, %p115
      %p118 = scmp.ne.s32.totalorder %s103, %s117
      %p119 = scmp.eq.s32.totalorder %s30, 0
      %p120 = por %p118, %p119
      %s122 = sadd.s32 %s121, 1
      %p125 = scmp.eq.s32.totalorder %s24, 1
      %p126 = scmp.ne.s32.totalorder %s121, %s123
      %p127 = scmp.eq.s32.totalorder %s24, 0
      %p128 = por %p126, %p127
      %p129 = scmp.ne.s32.totalorder %s121, %s123
      %p130 = scmp.eq.s32.totalorder %s29, 1
      %p131 = por %p129, %p130
      %p132 = scmp.ne.s32.totalorder %s123, %s124
      %p133 = scmp.eq.s32.totalorder %s29, 0
      %p134 = por %p132, %p133
      %p135 = scmp.ne.s32.totalorder %s123, %s124
      %p136 = scmp.eq.s32.totalorder %s30, 1
      %p137 = por %p135, %p136
      %p139 = scmp.ne.s32.totalorder %s124, %s138
      %p140 = scmp.eq.s32.totalorder %s30, 0
      %p141 = por %p139, %p140
      %s143 = sadd.s32 %s142, 1
      %p146 = scmp.eq.s32.totalorder %s24, 1
      %p147 = scmp.ne.s32.totalorder %s142, %s144
      %p148 = scmp.eq.s32.totalorder %s24, 0
      %p149 = por %p147, %p148
      %p150 = scmp.ne.s32.totalorder %s142, %s144
      %p151 = scmp.eq.s32.totalorder %s29, 1
      %p152 = por %p150, %p151
      %p153 = scmp.ne.s32.totalorder %s144, %s145
      %p154 = scmp.eq.s32.totalorder %s29, 0
      %p155 = por %p153, %p154
      %p156 = scmp.ne.s32.totalorder %s144, %s145
      %p157 = scmp.eq.s32.totalorder %s30, 1
      %p158 = por %p156, %p157
      %p160 = scmp.ne.s32.totalorder %s145, %s159
      %p161 = scmp.eq.s32.totalorder %s30, 0
      %p162 = por %p160, %p161
      %s164 = sadd.s32 %s163, 1
      %p167 = scmp.eq.s32.totalorder %s24, 1
      %p168 = scmp.ne.s32.totalorder %s163, %s165
      %p169 = scmp.eq.s32.totalorder %s24, 0
      %p170 = por %p168, %p169
      %p171 = scmp.ne.s32.totalorder %s163, %s165
      %p172 = scmp.eq.s32.totalorder %s29, 1
      %p173 = por %p171, %p172
      %p174 = scmp.ne.s32.totalorder %s165, %s166
      %p175 = scmp.eq.s32.totalorder %s29, 0
      %p176 = por %p174, %p175
      %p177 = scmp.ne.s32.totalorder %s165, %s166
      %p178 = scmp.eq.s32.totalorder %s30, 1
      %p179 = por %p177, %p178
      %p181 = scmp.ne.s32.totalorder %s166, %s180
      %p182 = scmp.eq.s32.totalorder %s30, 0
      %p183 = por %p181, %p182
      %s185 = sadd.s32 %s184, 1
      %p188 = scmp.eq.s32.totalorder %s24, 1
      %p189 = scmp.ne.s32.totalorder %s184, %s186
      %p190 = scmp.eq.s32.totalorder %s24, 0
      %p191 = por %p189, %p190
      %p192 = scmp.ne.s32.totalorder %s184, %s186
      %p193 = scmp.eq.s32.totalorder %s29, 1
      %p194 = por %p192, %p193
      %p195 = scmp.ne.s32.totalorder %s186, %s187
      %p196 = scmp.eq.s32.totalorder %s29, 0
      %p197 = por %p195, %p196
      %p198 = scmp.ne.s32.totalorder %s186, %s187
      %p199 = scmp.eq.s32.totalorder %s30, 1
      %p200 = por %p198, %p199
      %p202 = scmp.ne.s32.totalorder %s187, %s201
      %p203 = scmp.eq.s32.totalorder %s30, 0
      %p204 = por %p202, %p203
      %s205 = ssub.s32 %s24, %s31
      %p206 = scmp.eq.s32.totalorder %s205, 0
      %s208 = sadd.s32 %s207, 1
      %s209 = scalar_select %p206, %s207, %s208
      %p212 = pneg %p206
      %p213 = scmp.eq.s32.totalorder %s24, 1
      %p214 = por %p212, %p213
      %p215 = scmp.ne.s32.totalorder %s207, %s210
      %p216 = scmp.eq.s32.totalorder %s24, 0
      %p217 = por %p215, %p216
      %p218 = scmp.ne.s32.totalorder %s207, %s210
      %p219 = scmp.eq.s32.totalorder %s29, 1
      %p220 = por %p218, %p219
      %p221 = scmp.ne.s32.totalorder %s210, %s211
      %p222 = scmp.eq.s32.totalorder %s29, 0
      %p223 = por %p221, %p222
      %p224 = scmp.ne.s32.totalorder %s210, %s211
      %p225 = scmp.eq.s32.totalorder %s30, 1
      %p226 = por %p224, %p225
      %p228 = scmp.ne.s32.totalorder %s211, %s227
      %p229 = scmp.eq.s32.totalorder %s30, 0
      %p230 = por %p228, %p229
      %p231 = scmp.le.s32.totalorder 1, %s24
      %p232 = scmp.lt.s32.totalorder %s24, 3
      %p233 = pnand %p231, %p232
      %p234 = pneg %p233
      // Predicated region
      $region9: #{tpu_custom_call.1} parent=5 // pred_check
        _
      $region10: #{tpu_custom_call.1} parent=5 // pred_check_branch
        %236 = sbr.rel (%p233) target = $region12
      $region11: #{tpu_custom_call.1} parent=5 // pred_region
        %s237 = ssub.s32 %s24, 1
        // Predicated region
        $region13: #{tpu_custom_call.1} parent=11 // pred_check
          %p238 = pneg %p71
        $region14: #{tpu_custom_call.1} parent=11 // pred_check_branch
          %240 = sbr.rel (%p238) target = $region16
        $region15: #{tpu_custom_call.1} parent=11 // pred_region
          %242 = vsyncadd [#allocation6], 0
          %s243 = sshll.u32 %s1, 4
          %s244 = int_to_ptr.hbm [resolvable:$true] %s243
          %s245 = sshll.u32 [#allocation5], 4
          %s246 = int_to_ptr.vmem [resolvable:$true] %s245
          %251 = dma.hbm_to_vmem [thread:$0]  %s244, 2048, %s246, [#allocation6], 128, 128, 8
        $region16: #{tpu_custom_call.1} parent=11 // pred_fallthru
          _
        // Predicated region
        $region17: #{tpu_custom_call.1} parent=11 // pred_check
          %p252 = pneg %p92
        $region18: #{tpu_custom_call.1} parent=11 // pred_check_branch
          %254 = sbr.rel (%p252) target = $region20
        $region19: #{tpu_custom_call.1} parent=11 // pred_region
          %256 = vsyncadd [#allocation6], 0
          %s257 = sshll.u32 %s2, 4
          %s258 = int_to_ptr.hbm [resolvable:$true] %s257
          %s259 = sshll.u32 [#allocation7], 4
          %s260 = int_to_ptr.vmem [resolvable:$true] %s259
          %265 = dma.hbm_to_vmem [thread:$0]  %s258, 2048, %s260, [#allocation6], 64, 64, 4
        $region20: #{tpu_custom_call.1} parent=11 // pred_fallthru
          _
        // Predicated region
        $region21: #{tpu_custom_call.1} parent=11 // pred_check
          %p266 = pneg %p113
        $region22: #{tpu_custom_call.1} parent=11 // pred_check_branch
          %268 = sbr.rel (%p266) target = $region24
        $region23: #{tpu_custom_call.1} parent=11 // pred_region
          %270 = vsyncadd [#allocation9], 0
          %s271 = sshll.u32 %s3, 4
          %s272 = int_to_ptr.hbm [resolvable:$true] %s271
          %s273 = sshll.u32 [#allocation8], 4
          %s274 = int_to_ptr.vmem [resolvable:$true] %s273
          %279 = dma.hbm_to_vmem [thread:$0]  %s272, 1024, %s274, [#allocation9], 64, 64, 4
        $region24: #{tpu_custom_call.1} parent=11 // pred_fallthru
          _
        // Predicated region
        $region25: #{tpu_custom_call.1} parent=11 // pred_check
          %p280 = pneg %p134
        $region26: #{tpu_custom_call.1} parent=11 // pred_check_branch
          %282 = sbr.rel (%p280) target = $region28
        $region27: #{tpu_custom_call.1} parent=11 // pred_region
          %284 = vsyncadd [#allocation9], 0
          %s285 = sshll.u32 %s4, 4
          %s286 = int_to_ptr.hbm [resolvable:$true] %s285
          %s287 = sshll.u32 [#allocation10], 4
          %s288 = int_to_ptr.vmem [resolvable:$true] %s287
          %293 = dma.hbm_to_vmem [thread:$0]  %s286, 1024, %s288, [#allocation9], 64, 64, 4
        $region28: #{tpu_custom_call.1} parent=11 // pred_fallthru
          _
        // Predicated region
        $region29: #{tpu_custom_call.1} parent=11 // pred_check
          %p294 = pneg %p155
        $region30: #{tpu_custom_call.1} parent=11 // pred_check_branch
          %296 = sbr.rel (%p294) target = $region32
        $region31: #{tpu_custom_call.1} parent=11 // pred_region
          %298 = vsyncadd [#allocation12], 0
          %s299 = sshll.u32 %s5, 4
          %s300 = int_to_ptr.hbm [resolvable:$true] %s299
          %s301 = sshll.u32 [#allocation11], 4
          %s302 = int_to_ptr.vmem [resolvable:$true] %s301
          %307 = dma.hbm_to_vmem [thread:$0]  %s300, 1024, %s302, [#allocation12], 64, 64, 4
        $region32: #{tpu_custom_call.1} parent=11 // pred_fallthru
          _
        // Predicated region
        $region33: #{tpu_custom_call.1} parent=11 // pred_check
          %p308 = pneg %p176
        $region34: #{tpu_custom_call.1} parent=11 // pred_check_branch
          %310 = sbr.rel (%p308) target = $region36
        $region35: #{tpu_custom_call.1} parent=11 // pred_region
          %312 = vsyncadd [#allocation12], 0
          %s314 = sshll.u32 %s6, 4
          %s315 = int_to_ptr.hbm [resolvable:$true] %s314
          %s316 = sshll.u32 [#allocation13], 4
          %s317 = int_to_ptr.vmem [resolvable:$true] %s316
          %319 = dma.hbm_to_vmem [thread:$0]  %s315, 128, %s317, [#allocation12]
        $region36: #{tpu_custom_call.1} parent=11 // pred_fallthru
          _
        // Predicated region
        $region37: #{tpu_custom_call.1} parent=11 // pred_check
          %p320 = pneg %p197
        $region38: #{tpu_custom_call.1} parent=11 // pred_check_branch
          %322 = sbr.rel (%p320) target = $region40
        $region39: #{tpu_custom_call.1} parent=11 // pred_region
          %324 = vsyncadd [#allocation15], 0
          %s326 = sshll.u32 %s7, 4
          %s327 = int_to_ptr.hbm [resolvable:$true] %s326
          %s328 = sshll.u32 [#allocation14], 4
          %s329 = int_to_ptr.vmem [resolvable:$true] %s328
          %331 = dma.hbm_to_vmem [thread:$0]  %s327, 256, %s329, [#allocation15]
        $region40: #{tpu_custom_call.1} parent=11 // pred_fallthru
          _
      $region12: #{tpu_custom_call.1} parent=5 // pred_fallthru
        _
      %p332 = scmp.lt.s32.totalorder %s24, 2
      // Predicated region
      $region41: #{tpu_custom_call.1} parent=5 // pred_check
        %p333 = pneg %p332
      $region42: #{tpu_custom_call.1} parent=5 // pred_check_branch
        %335 = sbr.rel (%p333) target = $region44
      $region43: #{tpu_custom_call.1} parent=5 // pred_region
        // Predicated region
        $region45: #{tpu_custom_call.1} parent=43 // pred_check
          %p336 = pneg %p44
        $region46: #{tpu_custom_call.1} parent=43 // pred_check_branch
          %338 = sbr.rel (%p336) target = $region48
        $region47: #{tpu_custom_call.1} parent=43 // pred_region
          %s339 = sand.u32 %s34, 1
          %s340 = scalar_lea.sflag [#allocation3], %s339
          %s341 = sand.u32 %s34, 1
          %s342 = smul.addr %s341, 128
          %s343 = scalar_lea.vmem [#allocation2], %s342
          %s344 = smul.u32 32, %s24
          %346 = vsyncadd %s340, 0
          %s347 = smul.addr %s344, 4
          %s348 = scalar_lea.hbm %s0, %s347
          %s349 = sshll.u32 %s348, 4
          %s350 = int_to_ptr.hbm [resolvable:$true] %s349
          %s351 = sshll.u32 %s343, 4
          %s352 = int_to_ptr.vmem [resolvable:$true] %s351
          %357 = dma.hbm_to_vmem [thread:$0]  %s350, 2048, %s352, %s340, 64, 64, 4
        $region48: #{tpu_custom_call.1} parent=43 // pred_fallthru
          _
      $region44: #{tpu_custom_call.1} parent=5 // pred_fallthru
        _
      %p358 = scmp.le.s32.totalorder 1, %s24
      %p359 = scmp.lt.s32.totalorder %s24, 3
      %p360 = pnand %p358, %p359
      %p361 = pneg %p360
      // Predicated region
      $region49: #{tpu_custom_call.1} parent=5 // pred_check
        _
      $region50: #{tpu_custom_call.1} parent=5 // pred_check_branch
        %363 = sbr.rel (%p360) target = $region52
      $region51: #{tpu_custom_call.1} parent=5 // pred_region
        %s364 = ssub.s32 %s24, 1
        %s365 = sand.u32 %s37, 1
        %s366 = scalar_lea.sflag [#allocation3], %s365
        %s367 = sand.u32 %s37, 1
        %s368 = smul.addr %s367, 128
        %s369 = scalar_lea.vmem [#allocation2], %s368
        // Predicated region
        $region53: #{tpu_custom_call.1} parent=51 // pred_check
          %p370 = pneg %p50
        $region54: #{tpu_custom_call.1} parent=51 // pred_check_branch
          %372 = sbr.rel (%p370) target = $region56
        $region55: #{tpu_custom_call.1} parent=51 // pred_region
          %374 = dma.done %s366, 2048
        $region56: #{tpu_custom_call.1} parent=51 // pred_fallthru
          _
        // Predicated region
        $region57: #{tpu_custom_call.1} parent=51 // pred_check
          %p375 = pneg %p71
        $region58: #{tpu_custom_call.1} parent=51 // pred_check_branch
          %377 = sbr.rel (%p375) target = $region60
        $region59: #{tpu_custom_call.1} parent=51 // pred_region
          %379 = dma.done [#allocation6], 2048
        $region60: #{tpu_custom_call.1} parent=51 // pred_fallthru
          _
        // Predicated region
        $region61: #{tpu_custom_call.1} parent=51 // pred_check
          %p380 = pneg %p92
        $region62: #{tpu_custom_call.1} parent=51 // pred_check_branch
          %382 = sbr.rel (%p380) target = $region64
        $region63: #{tpu_custom_call.1} parent=51 // pred_region
          %384 = dma.done [#allocation6], 2048
        $region64: #{tpu_custom_call.1} parent=51 // pred_fallthru
          _
        // Predicated region
        $region65: #{tpu_custom_call.1} parent=51 // pred_check
          %p385 = pneg %p113
        $region66: #{tpu_custom_call.1} parent=51 // pred_check_branch
          %387 = sbr.rel (%p385) target = $region68
        $region67: #{tpu_custom_call.1} parent=51 // pred_region
          %389 = dma.done [#allocation9], 1024
        $region68: #{tpu_custom_call.1} parent=51 // pred_fallthru
          _
        // Predicated region
        $region69: #{tpu_custom_call.1} parent=51 // pred_check
          %p390 = pneg %p134
        $region70: #{tpu_custom_call.1} parent=51 // pred_check_branch
          %392 = sbr.rel (%p390) target = $region72
        $region71: #{tpu_custom_call.1} parent=51 // pred_region
          %394 = dma.done [#allocation9], 1024
        $region72: #{tpu_custom_call.1} parent=51 // pred_fallthru
          _
        // Predicated region
        $region73: #{tpu_custom_call.1} parent=51 // pred_check
          %p395 = pneg %p155
        $region74: #{tpu_custom_call.1} parent=51 // pred_check_branch
          %397 = sbr.rel (%p395) target = $region76
        $region75: #{tpu_custom_call.1} parent=51 // pred_region
          %399 = dma.done [#allocation12], 1024
        $region76: #{tpu_custom_call.1} parent=51 // pred_fallthru
          _
        // Predicated region
        $region77: #{tpu_custom_call.1} parent=51 // pred_check
          %p400 = pneg %p176
        $region78: #{tpu_custom_call.1} parent=51 // pred_check_branch
          %402 = sbr.rel (%p400) target = $region80
        $region79: #{tpu_custom_call.1} parent=51 // pred_region
          %404 = dma.done [#allocation12], 128
        $region80: #{tpu_custom_call.1} parent=51 // pred_fallthru
          _
        // Predicated region
        $region81: #{tpu_custom_call.1} parent=51 // pred_check
          %p405 = pneg %p197
        $region82: #{tpu_custom_call.1} parent=51 // pred_check_branch
          %407 = sbr.rel (%p405) target = $region84
        $region83: #{tpu_custom_call.1} parent=51 // pred_region
          %409 = dma.done [#allocation15], 256
        $region84: #{tpu_custom_call.1} parent=51 // pred_fallthru
          _
        %s410 = sand.u32 %s37, 1
        %s411 = scalar_lea.sflag [#allocation3], %s410
        %s412 = sand.u32 %s37, 1
        %s413 = smul.addr %s412, 128
        %s414 = scalar_lea.vmem [#allocation2], %s413
        %p415 = pneg %p50
        %p416 = pneg %p47
        %p417 = pneg %p71
        %p418 = pneg %p68
        %p419 = pneg %p92
        %p420 = pneg %p89
        %p421 = pneg %p113
        %p422 = pneg %p110
        %p423 = pneg %p134
        %p424 = pneg %p131
        %p425 = pneg %p155
        %p426 = pneg %p152
        %p427 = pneg %p176
        %p428 = pneg %p173
        %p429 = pneg %p197
        %p430 = pneg %p194
        %p431 = pneg %p223
        %p432 = pneg %p220
        %s433 = sand.u32 %s210, 1
        %s434 = scalar_lea.sflag [#allocation4], %s433
        %s435 = sand.u32 %s210, 1
        %s436 = smul.addr %s435, 2
        %s437 = scalar_lea.vmem [#allocation16], %s436
        %s438 = smul.u32 32, %s29
        %s439 = smul.u32 2, %s29
        %v440 = vld [vmem:[%s369] sm:$0xf]
        %v441 = vld [vmem:[%s369 + $0x4] sm:$0xf]
        %v442 = vld [vmem:[%s369 + $0x8] sm:$0xf]
        %v443 = vld [vmem:[%s369 + $0xc] sm:$0xf]
        %v444 = vld [vmem:[%s369 + $0x10] sm:$0xf]
        %v445 = vld [vmem:[%s369 + $0x14] sm:$0xf]
        %v446 = vld [vmem:[%s369 + $0x18] sm:$0xf]
        %v447 = vld [vmem:[%s369 + $0x1c] sm:$0xf]
        %v448 = vld [vmem:[%s369 + $0x20] sm:$0xf]
        %v449 = vld [vmem:[%s369 + $0x24] sm:$0xf]
        %v450 = vld [vmem:[%s369 + $0x28] sm:$0xf]
        %v451 = vld [vmem:[%s369 + $0x2c] sm:$0xf]
        %v452 = vld [vmem:[%s369 + $0x30] sm:$0xf]
        %v453 = vld [vmem:[%s369 + $0x34] sm:$0xf]
        %v454 = vld [vmem:[%s369 + $0x38] sm:$0xf]
        %v455 = vld [vmem:[%s369 + $0x3c] sm:$0xf]
        %v456 = vld [vmem:[%s369 + $0x40] sm:$0xf]
        %v457 = vld [vmem:[%s369 + $0x44] sm:$0xf]
        %v458 = vld [vmem:[%s369 + $0x48] sm:$0xf]
        %v459 = vld [vmem:[%s369 + $0x4c] sm:$0xf]
        %v460 = vld [vmem:[%s369 + $0x50] sm:$0xf]
        %v461 = vld [vmem:[%s369 + $0x54] sm:$0xf]
        %v462 = vld [vmem:[%s369 + $0x58] sm:$0xf]
        %v463 = vld [vmem:[%s369 + $0x5c] sm:$0xf]
        %v464 = vld [vmem:[%s369 + $0x60] sm:$0xf]
        %v465 = vld [vmem:[%s369 + $0x64] sm:$0xf]
        %v466 = vld [vmem:[%s369 + $0x68] sm:$0xf]
        %v467 = vld [vmem:[%s369 + $0x6c] sm:$0xf]
        %v468 = vld [vmem:[%s369 + $0x70] sm:$0xf]
        %v469 = vld [vmem:[%s369 + $0x74] sm:$0xf]
        %v470 = vld [vmem:[%s369 + $0x78] sm:$0xf]
        %v471 = vld [vmem:[%s369 + $0x7c] sm:$0xf]
        %v472 = vld [vmem:[#allocation5] sm:$0xff]
        %v473 = vld [vmem:[#allocation5 + $0x8] sm:$0xff]
        %v474 = vld [vmem:[#allocation5 + $0x10] sm:$0xff]
        %v475 = vld [vmem:[#allocation5 + $0x18] sm:$0xff]
        %v476 = vld [vmem:[#allocation5 + $0x20] sm:$0xff]
        %v477 = vld [vmem:[#allocation5 + $0x28] sm:$0xff]
        %v478 = vld [vmem:[#allocation5 + $0x30] sm:$0xff]
        %v479 = vld [vmem:[#allocation5 + $0x38] sm:$0xff]
        %v480 = vld [vmem:[#allocation5 + $0x40] sm:$0xff]
        %v481 = vld [vmem:[#allocation5 + $0x48] sm:$0xff]
        %v482 = vld [vmem:[#allocation5 + $0x50] sm:$0xff]
        %v483 = vld [vmem:[#allocation5 + $0x58] sm:$0xff]
        %v484 = vld [vmem:[#allocation5 + $0x60] sm:$0xff]
        %v485 = vld [vmem:[#allocation5 + $0x68] sm:$0xff]
        %v486 = vld [vmem:[#allocation5 + $0x70] sm:$0xff]
        %v487 = vld [vmem:[#allocation5 + $0x78] sm:$0xff]
        %v488 = vld [vmem:[#allocation14] ss:$8 sm:$0x3]
        %v490 = vperm.slane %v488, 0
        %v491 = vperm.slane %v488, 1
        %v526 = vunpack.c.l.b16 %v440
        %v527 = vunpack.c.l.b16 %v441
        %v528 = vunpack.c.l.b16 %v442
        %v529 = vunpack.c.l.b16 %v443
        %v530 = vunpack.c.l.b16 %v444
        %v531 = vunpack.c.l.b16 %v445
        %v532 = vunpack.c.l.b16 %v446
        %v533 = vunpack.c.l.b16 %v447
        %v534 = vunpack.c.l.b16 %v448
        %v535 = vunpack.c.l.b16 %v449
        %v536 = vunpack.c.l.b16 %v450
        %v537 = vunpack.c.l.b16 %v451
        %v538 = vunpack.c.l.b16 %v452
        %v539 = vunpack.c.l.b16 %v453
        %v540 = vunpack.c.l.b16 %v454
        %v541 = vunpack.c.l.b16 %v455
        %v542 = vunpack.c.l.b16 %v456
        %v543 = vunpack.c.l.b16 %v457
        %v544 = vunpack.c.l.b16 %v458
        %v545 = vunpack.c.l.b16 %v459
        %v546 = vunpack.c.l.b16 %v460
        %v547 = vunpack.c.l.b16 %v461
        %v548 = vunpack.c.l.b16 %v462
        %v549 = vunpack.c.l.b16 %v463
        %v550 = vunpack.c.l.b16 %v464
        %v551 = vunpack.c.l.b16 %v465
        %v552 = vunpack.c.l.b16 %v466
        %v553 = vunpack.c.l.b16 %v467
        %v554 = vunpack.c.l.b16 %v468
        %v555 = vunpack.c.l.b16 %v469
        %v556 = vunpack.c.l.b16 %v470
        %v557 = vunpack.c.l.b16 %v471
        %v558 = vpack.c.b16 %v527, %v526
        %v559 = vpack.c.b16 %v529, %v528
        %v560 = vpack.c.b16 %v531, %v530
        %v561 = vpack.c.b16 %v533, %v532
        %v562 = vpack.c.b16 %v535, %v534
        %v563 = vpack.c.b16 %v537, %v536
        %v564 = vpack.c.b16 %v539, %v538
        %v565 = vpack.c.b16 %v541, %v540
        %v566 = vpack.c.b16 %v543, %v542
        %v567 = vpack.c.b16 %v545, %v544
        %v568 = vpack.c.b16 %v547, %v546
        %v569 = vpack.c.b16 %v549, %v548
        %v570 = vpack.c.b16 %v551, %v550
        %v571 = vpack.c.b16 %v553, %v552
        %v572 = vpack.c.b16 %v555, %v554
        %v573 = vpack.c.b16 %v557, %v556
        %v606 = vunpack.c.l.b16 %v472
        %v607 = vunpack.c.h.b16 %v472
        %v608 = vunpack.c.l.b16 %v473
        %v609 = vunpack.c.h.b16 %v473
        %v610 = vunpack.c.l.b16 %v474
        %v611 = vunpack.c.h.b16 %v474
        %v612 = vunpack.c.l.b16 %v475
        %v613 = vunpack.c.h.b16 %v475
        %v614 = vunpack.c.l.b16 %v476
        %v615 = vunpack.c.h.b16 %v476
        %v616 = vunpack.c.l.b16 %v477
        %v617 = vunpack.c.h.b16 %v477
        %v618 = vunpack.c.l.b16 %v478
        %v619 = vunpack.c.h.b16 %v478
        %v620 = vunpack.c.l.b16 %v479
        %v621 = vunpack.c.h.b16 %v479
        %v622 = vunpack.c.l.b16 %v480
        %v623 = vunpack.c.h.b16 %v480
        %v624 = vunpack.c.l.b16 %v481
        %v625 = vunpack.c.h.b16 %v481
        %v626 = vunpack.c.l.b16 %v482
        %v627 = vunpack.c.h.b16 %v482
        %v628 = vunpack.c.l.b16 %v483
        %v629 = vunpack.c.h.b16 %v483
        %v630 = vunpack.c.l.b16 %v484
        %v631 = vunpack.c.h.b16 %v484
        %v632 = vunpack.c.l.b16 %v485
        %v633 = vunpack.c.h.b16 %v485
        %v634 = vunpack.c.l.b16 %v486
        %v635 = vunpack.c.h.b16 %v486
        %v636 = vunpack.c.l.b16 %v487
        %v637 = vunpack.c.h.b16 %v487
        %v638 = vpack.c.b16 %v608, %v606
        %v639 = vpack.c.b16 %v609, %v607
        %v640 = vpack.c.b16 %v612, %v610
        %v641 = vpack.c.b16 %v613, %v611
        %v642 = vpack.c.b16 %v616, %v614
        %v643 = vpack.c.b16 %v617, %v615
        %v644 = vpack.c.b16 %v620, %v618
        %v645 = vpack.c.b16 %v621, %v619
        %v646 = vpack.c.b16 %v624, %v622
        %v647 = vpack.c.b16 %v625, %v623
        %v648 = vpack.c.b16 %v628, %v626
        %v649 = vpack.c.b16 %v629, %v627
        %v650 = vpack.c.b16 %v632, %v630
        %v651 = vpack.c.b16 %v633, %v631
        %v652 = vpack.c.b16 %v636, %v634
        %v653 = vpack.c.b16 %v637, %v635
        %670 = vmatpush.bf16.msra.mxu0 %v652
        %671 = vmatpush.bf16.msra.mxu0 %v650
        %672 = vmatpush.bf16.msra.mxu0 %v648
        %673 = vmatpush.bf16.msra.mxu0 %v646
        %674 = vmatpush.bf16.msra.mxu0 %v644
        %675 = vmatpush.bf16.msra.mxu0 %v642
        %676 = vmatpush.bf16.msra.mxu0 %v640
        %677 = vmatpush.bf16.msra.mxu0 %v638
        %678 = vmatmul.bf16.gmra.mxu0 %v558
        %v679 = vpop.f32.mrf.mxu0
        %v680 = vadd.f32 %v490, %v679
        %v681 = vpop.f32.mrf.mxu0
        %v682 = vadd.f32 %v490, %v681
        %683 = vmatmul.bf16.gmra.mxu0 %v559
        %v684 = vpop.f32.mrf.mxu0
        %v685 = vadd.f32 %v490, %v684
        %v686 = vpop.f32.mrf.mxu0
        %v687 = vadd.f32 %v490, %v686
        %688 = vmatmul.bf16.gmra.mxu0 %v560
        %v689 = vpop.f32.mrf.mxu0
        %v690 = vadd.f32 %v490, %v689
        %v691 = vpop.f32.mrf.mxu0
        %v692 = vadd.f32 %v490, %v691
        %693 = vmatmul.bf16.gmra.mxu0 %v561
        %v694 = vpop.f32.mrf.mxu0
        %v695 = vadd.f32 %v490, %v694
        %v696 = vpop.f32.mrf.mxu0
        %v697 = vadd.f32 %v490, %v696
        %698 = vmatmul.bf16.gmra.mxu0 %v562
        %v699 = vpop.f32.mrf.mxu0
        %v700 = vadd.f32 %v490, %v699
        %v701 = vpop.f32.mrf.mxu0
        %v702 = vadd.f32 %v490, %v701
        %703 = vmatmul.bf16.gmra.mxu0 %v563
        %v704 = vpop.f32.mrf.mxu0
        %v705 = vadd.f32 %v490, %v704
        %v706 = vpop.f32.mrf.mxu0
        %v707 = vadd.f32 %v490, %v706
        %708 = vmatmul.bf16.gmra.mxu0 %v564
        %v709 = vpop.f32.mrf.mxu0
        %v710 = vadd.f32 %v490, %v709
        %v711 = vpop.f32.mrf.mxu0
        %v712 = vadd.f32 %v490, %v711
        %713 = vmatmul.bf16.gmra.mxu0 %v565
        %v714 = vpop.f32.mrf.mxu0
        %v715 = vadd.f32 %v490, %v714
        %v716 = vpop.f32.mrf.mxu0
        %v717 = vadd.f32 %v490, %v716
        %718 = vmatmul.bf16.gmra.mxu0 %v566
        %v719 = vpop.f32.mrf.mxu0
        %v720 = vadd.f32 %v490, %v719
        %v721 = vpop.f32.mrf.mxu0
        %v722 = vadd.f32 %v490, %v721
        %723 = vmatmul.bf16.gmra.mxu0 %v567
        %v724 = vpop.f32.mrf.mxu0
        %v725 = vadd.f32 %v490, %v724
        %v726 = vpop.f32.mrf.mxu0
        %v727 = vadd.f32 %v490, %v726
        %728 = vmatmul.bf16.gmra.mxu0 %v568
        %v729 = vpop.f32.mrf.mxu0
        %v730 = vadd.f32 %v490, %v729
        %v731 = vpop.f32.mrf.mxu0
        %v732 = vadd.f32 %v490, %v731
        %733 = vmatmul.bf16.gmra.mxu0 %v569
        %v734 = vpop.f32.mrf.mxu0
        %v735 = vadd.f32 %v490, %v734
        %v736 = vpop.f32.mrf.mxu0
        %v737 = vadd.f32 %v490, %v736
        %738 = vmatmul.bf16.gmra.mxu0 %v570
        %v739 = vpop.f32.mrf.mxu0
        %v740 = vadd.f32 %v490, %v739
        %v741 = vpop.f32.mrf.mxu0
        %v742 = vadd.f32 %v490, %v741
        %743 = vmatmul.bf16.gmra.mxu0 %v571
        %v744 = vpop.f32.mrf.mxu0
        %v745 = vadd.f32 %v490, %v744
        %v746 = vpop.f32.mrf.mxu0
        %v747 = vadd.f32 %v490, %v746
        %748 = vmatmul.bf16.gmra.mxu0 %v572
        %v749 = vpop.f32.mrf.mxu0
        %v750 = vadd.f32 %v490, %v749
        %v751 = vpop.f32.mrf.mxu0
        %v752 = vadd.f32 %v490, %v751
        %753 = vmatmul.bf16.gmra.mxu0 %v573
        %v754 = vpop.f32.mrf.mxu0
        %v755 = vadd.f32 %v490, %v754
        %v756 = vpop.f32.mrf.mxu0
        %v757 = vadd.f32 %v490, %v756
        %758 = vdwg.mxu0
        %759 = vmatpush.bf16.msra.mxu0 %v653
        %760 = vmatpush.bf16.msra.mxu0 %v651
        %761 = vmatpush.bf16.msra.mxu0 %v649
        %762 = vmatpush.bf16.msra.mxu0 %v647
        %763 = vmatpush.bf16.msra.mxu0 %v645
        %764 = vmatpush.bf16.msra.mxu0 %v643
        %765 = vmatpush.bf16.msra.mxu0 %v641
        %766 = vmatpush.bf16.msra.mxu0 %v639
        %767 = vmatmul.bf16.gmra.mxu0 %v558
        %v768 = vpop.f32.mrf.mxu0
        %v769 = vadd.f32 %v491, %v768
        %v770 = vpop.f32.mrf.mxu0
        %v771 = vadd.f32 %v491, %v770
        %772 = vmatmul.bf16.gmra.mxu0 %v559
        %v773 = vpop.f32.mrf.mxu0
        %v774 = vadd.f32 %v491, %v773
        %v775 = vpop.f32.mrf.mxu0
        %v776 = vadd.f32 %v491, %v775
        %777 = vmatmul.bf16.gmra.mxu0 %v560
        %v778 = vpop.f32.mrf.mxu0
        %v779 = vadd.f32 %v491, %v778
        %v780 = vpop.f32.mrf.mxu0
        %v781 = vadd.f32 %v491, %v780
        %782 = vmatmul.bf16.gmra.mxu0 %v561
        %v783 = vpop.f32.mrf.mxu0
        %v784 = vadd.f32 %v491, %v783
        %v785 = vpop.f32.mrf.mxu0
        %v786 = vadd.f32 %v491, %v785
        %787 = vmatmul.bf16.gmra.mxu0 %v562
        %v788 = vpop.f32.mrf.mxu0
        %v789 = vadd.f32 %v491, %v788
        %v790 = vpop.f32.mrf.mxu0
        %v791 = vadd.f32 %v491, %v790
        %792 = vmatmul.bf16.gmra.mxu0 %v563
        %v793 = vpop.f32.mrf.mxu0
        %v794 = vadd.f32 %v491, %v793
        %v795 = vpop.f32.mrf.mxu0
        %v796 = vadd.f32 %v491, %v795
        %797 = vmatmul.bf16.gmra.mxu0 %v564
        %v798 = vpop.f32.mrf.mxu0
        %v799 = vadd.f32 %v491, %v798
        %v800 = vpop.f32.mrf.mxu0
        %v801 = vadd.f32 %v491, %v800
        %802 = vmatmul.bf16.gmra.mxu0 %v565
        %v803 = vpop.f32.mrf.mxu0
        %v804 = vadd.f32 %v491, %v803
        %v805 = vpop.f32.mrf.mxu0
        %v806 = vadd.f32 %v491, %v805
        %807 = vmatmul.bf16.gmra.mxu0 %v566
        %v808 = vpop.f32.mrf.mxu0
        %v809 = vadd.f32 %v491, %v808
        %v810 = vpop.f32.mrf.mxu0
        %v811 = vadd.f32 %v491, %v810
        %812 = vmatmul.bf16.gmra.mxu0 %v567
        %v813 = vpop.f32.mrf.mxu0
        %v814 = vadd.f32 %v491, %v813
        %v815 = vpop.f32.mrf.mxu0
        %v816 = vadd.f32 %v491, %v815
        %817 = vmatmul.bf16.gmra.mxu0 %v568
        %v818 = vpop.f32.mrf.mxu0
        %v819 = vadd.f32 %v491, %v818
        %v820 = vpop.f32.mrf.mxu0
        %v821 = vadd.f32 %v491, %v820
        %822 = vmatmul.bf16.gmra.mxu0 %v569
        %v823 = vpop.f32.mrf.mxu0
        %v824 = vadd.f32 %v491, %v823
        %v825 = vpop.f32.mrf.mxu0
        %v826 = vadd.f32 %v491, %v825
        %827 = vmatmul.bf16.gmra.mxu0 %v570
        %v828 = vpop.f32.mrf.mxu0
        %v829 = vadd.f32 %v491, %v828
        %v830 = vpop.f32.mrf.mxu0
        %v831 = vadd.f32 %v491, %v830
        %832 = vmatmul.bf16.gmra.mxu0 %v571
        %v833 = vpop.f32.mrf.mxu0
        %v834 = vadd.f32 %v491, %v833
        %v835 = vpop.f32.mrf.mxu0
        %v836 = vadd.f32 %v491, %v835
        %837 = vmatmul.bf16.gmra.mxu0 %v572
        %v838 = vpop.f32.mrf.mxu0
        %v839 = vadd.f32 %v491, %v838
        %v840 = vpop.f32.mrf.mxu0
        %v841 = vadd.f32 %v491, %v840
        %842 = vmatmul.bf16.gmra.mxu0 %v573
        %v843 = vpop.f32.mrf.mxu0
        %v844 = vadd.f32 %v491, %v843
        %v845 = vpop.f32.mrf.mxu0
        %v846 = vadd.f32 %v491, %v845
        %847 = vdwg.mxu0
        %v848 = vmax.f32 %v680, 0.0
        %v849 = vmax.f32 %v769, 0.0
        %v850 = vmax.f32 %v682, 0.0
        %v851 = vmax.f32 %v771, 0.0
        %v852 = vmax.f32 %v685, 0.0
        %v853 = vmax.f32 %v774, 0.0
        %v854 = vmax.f32 %v687, 0.0
        %v855 = vmax.f32 %v776, 0.0
        %v856 = vmax.f32 %v690, 0.0
        %v857 = vmax.f32 %v779, 0.0
        %v858 = vmax.f32 %v692, 0.0
        %v859 = vmax.f32 %v781, 0.0
        %v860 = vmax.f32 %v695, 0.0
        %v861 = vmax.f32 %v784, 0.0
        %v862 = vmax.f32 %v697, 0.0
        %v863 = vmax.f32 %v786, 0.0
        %v864 = vmax.f32 %v700, 0.0
        %v865 = vmax.f32 %v789, 0.0
        %v866 = vmax.f32 %v702, 0.0
        %v867 = vmax.f32 %v791, 0.0
        %v868 = vmax.f32 %v705, 0.0
        %v869 = vmax.f32 %v794, 0.0
        %v870 = vmax.f32 %v707, 0.0
        %v871 = vmax.f32 %v796, 0.0
        %v872 = vmax.f32 %v710, 0.0
        %v873 = vmax.f32 %v799, 0.0
        %v874 = vmax.f32 %v712, 0.0
        %v875 = vmax.f32 %v801, 0.0
        %v876 = vmax.f32 %v715, 0.0
        %v877 = vmax.f32 %v804, 0.0
        %v878 = vmax.f32 %v717, 0.0
        %v879 = vmax.f32 %v806, 0.0
        %v880 = vmax.f32 %v720, 0.0
        %v881 = vmax.f32 %v809, 0.0
        %v882 = vmax.f32 %v722, 0.0
        %v883 = vmax.f32 %v811, 0.0
        %v884 = vmax.f32 %v725, 0.0
        %v885 = vmax.f32 %v814, 0.0
        %v886 = vmax.f32 %v727, 0.0
        %v887 = vmax.f32 %v816, 0.0
        %v888 = vmax.f32 %v730, 0.0
        %v889 = vmax.f32 %v819, 0.0
        %v890 = vmax.f32 %v732, 0.0
        %v891 = vmax.f32 %v821, 0.0
        %v892 = vmax.f32 %v735, 0.0
        %v893 = vmax.f32 %v824, 0.0
        %v894 = vmax.f32 %v737, 0.0
        %v895 = vmax.f32 %v826, 0.0
        %v896 = vmax.f32 %v740, 0.0
        %v897 = vmax.f32 %v829, 0.0
        %v898 = vmax.f32 %v742, 0.0
        %v899 = vmax.f32 %v831, 0.0
        %v900 = vmax.f32 %v745, 0.0
        %v901 = vmax.f32 %v834, 0.0
        %v902 = vmax.f32 %v747, 0.0
        %v903 = vmax.f32 %v836, 0.0
        %v904 = vmax.f32 %v750, 0.0
        %v905 = vmax.f32 %v839, 0.0
        %v906 = vmax.f32 %v752, 0.0
        %v907 = vmax.f32 %v841, 0.0
        %v908 = vmax.f32 %v755, 0.0
        %v909 = vmax.f32 %v844, 0.0
        %v910 = vmax.f32 %v757, 0.0
        %v911 = vmax.f32 %v846, 0.0
        %v912 = vpack.c.bf16 %v850, %v848
        %v913 = vpack.c.bf16 %v851, %v849
        %v914 = vpack.c.bf16 %v854, %v852
        %v915 = vpack.c.bf16 %v855, %v853
        %v916 = vpack.c.bf16 %v858, %v856
        %v917 = vpack.c.bf16 %v859, %v857
        %v918 = vpack.c.bf16 %v862, %v860
        %v919 = vpack.c.bf16 %v863, %v861
        %v920 = vpack.c.bf16 %v866, %v864
        %v921 = vpack.c.bf16 %v867, %v865
        %v922 = vpack.c.bf16 %v870, %v868
        %v923 = vpack.c.bf16 %v871, %v869
        %v924 = vpack.c.bf16 %v874, %v872
        %v925 = vpack.c.bf16 %v875, %v873
        %v926 = vpack.c.bf16 %v878, %v876
        %v927 = vpack.c.bf16 %v879, %v877
        %v928 = vpack.c.bf16 %v882, %v880
        %v929 = vpack.c.bf16 %v883, %v881
        %v930 = vpack.c.bf16 %v886, %v884
        %v931 = vpack.c.bf16 %v887, %v885
        %v932 = vpack.c.bf16 %v890, %v888
        %v933 = vpack.c.bf16 %v891, %v889
        %v934 = vpack.c.bf16 %v894, %v892
        %v935 = vpack.c.bf16 %v895, %v893
        %v936 = vpack.c.bf16 %v898, %v896
        %v937 = vpack.c.bf16 %v899, %v897
        %v938 = vpack.c.bf16 %v902, %v900
        %v939 = vpack.c.bf16 %v903, %v901
        %v940 = vpack.c.bf16 %v906, %v904
        %v941 = vpack.c.bf16 %v907, %v905
        %v942 = vpack.c.bf16 %v910, %v908
        %v943 = vpack.c.bf16 %v911, %v909
        %v944 = vld [vmem:[#allocation7] sm:$0xf]
        %v945 = vld [vmem:[#allocation7 + $0x4] sm:$0xf]
        %v946 = vld [vmem:[#allocation7 + $0x8] sm:$0xf]
        %v947 = vld [vmem:[#allocation7 + $0xc] sm:$0xf]
        %v948 = vld [vmem:[#allocation7 + $0x10] sm:$0xf]
        %v949 = vld [vmem:[#allocation7 + $0x14] sm:$0xf]
        %v950 = vld [vmem:[#allocation7 + $0x18] sm:$0xf]
        %v951 = vld [vmem:[#allocation7 + $0x1c] sm:$0xf]
        %v952 = vld [vmem:[#allocation7 + $0x20] sm:$0xf]
        %v953 = vld [vmem:[#allocation7 + $0x24] sm:$0xf]
        %v954 = vld [vmem:[#allocation7 + $0x28] sm:$0xf]
        %v955 = vld [vmem:[#allocation7 + $0x2c] sm:$0xf]
        %v956 = vld [vmem:[#allocation7 + $0x30] sm:$0xf]
        %v957 = vld [vmem:[#allocation7 + $0x34] sm:$0xf]
        %v958 = vld [vmem:[#allocation7 + $0x38] sm:$0xf]
        %v959 = vld [vmem:[#allocation7 + $0x3c] sm:$0xf]
        %v960 = vld [vmem:[#allocation7 + $0x40] sm:$0xf]
        %v961 = vld [vmem:[#allocation7 + $0x44] sm:$0xf]
        %v962 = vld [vmem:[#allocation7 + $0x48] sm:$0xf]
        %v963 = vld [vmem:[#allocation7 + $0x4c] sm:$0xf]
        %v964 = vld [vmem:[#allocation7 + $0x50] sm:$0xf]
        %v965 = vld [vmem:[#allocation7 + $0x54] sm:$0xf]
        %v966 = vld [vmem:[#allocation7 + $0x58] sm:$0xf]
        %v967 = vld [vmem:[#allocation7 + $0x5c] sm:$0xf]
        %v968 = vld [vmem:[#allocation7 + $0x60] sm:$0xf]
        %v969 = vld [vmem:[#allocation7 + $0x64] sm:$0xf]
        %v970 = vld [vmem:[#allocation7 + $0x68] sm:$0xf]
        %v971 = vld [vmem:[#allocation7 + $0x6c] sm:$0xf]
        %v972 = vld [vmem:[#allocation7 + $0x70] sm:$0xf]
        %v973 = vld [vmem:[#allocation7 + $0x74] sm:$0xf]
        %v974 = vld [vmem:[#allocation7 + $0x78] sm:$0xf]
        %v975 = vld [vmem:[#allocation7 + $0x7c] sm:$0xf]
        %v976 = vld [vmem:[#allocation14 + $0x1] ss:$0 sm:$0xff]
        %v1009 = vunpack.c.l.b16 %v944
        %v1010 = vunpack.c.l.b16 %v945
        %v1011 = vunpack.c.l.b16 %v946
        %v1012 = vunpack.c.l.b16 %v947
        %v1013 = vunpack.c.l.b16 %v948
        %v1014 = vunpack.c.l.b16 %v949
        %v1015 = vunpack.c.l.b16 %v950
        %v1016 = vunpack.c.l.b16 %v951
        %v1017 = vunpack.c.l.b16 %v952
        %v1018 = vunpack.c.l.b16 %v953
        %v1019 = vunpack.c.l.b16 %v954
        %v1020 = vunpack.c.l.b16 %v955
        %v1021 = vunpack.c.l.b16 %v956
        %v1022 = vunpack.c.l.b16 %v957
        %v1023 = vunpack.c.l.b16 %v958
        %v1024 = vunpack.c.l.b16 %v959
        %v1025 = vunpack.c.l.b16 %v960
        %v1026 = vunpack.c.l.b16 %v961
        %v1027 = vunpack.c.l.b16 %v962
        %v1028 = vunpack.c.l.b16 %v963
        %v1029 = vunpack.c.l.b16 %v964
        %v1030 = vunpack.c.l.b16 %v965
        %v1031 = vunpack.c.l.b16 %v966
        %v1032 = vunpack.c.l.b16 %v967
        %v1033 = vunpack.c.l.b16 %v968
        %v1034 = vunpack.c.l.b16 %v969
        %v1035 = vunpack.c.l.b16 %v970
        %v1036 = vunpack.c.l.b16 %v971
        %v1037 = vunpack.c.l.b16 %v972
        %v1038 = vunpack.c.l.b16 %v973
        %v1039 = vunpack.c.l.b16 %v974
        %v1040 = vunpack.c.l.b16 %v975
        %v1041 = vpack.c.b16 %v1010, %v1009
        %v1042 = vpack.c.b16 %v1012, %v1011
        %v1043 = vpack.c.b16 %v1014, %v1013
        %v1044 = vpack.c.b16 %v1016, %v1015
        %v1045 = vpack.c.b16 %v1018, %v1017
        %v1046 = vpack.c.b16 %v1020, %v1019
        %v1047 = vpack.c.b16 %v1022, %v1021
        %v1048 = vpack.c.b16 %v1024, %v1023
        %v1049 = vpack.c.b16 %v1026, %v1025
        %v1050 = vpack.c.b16 %v1028, %v1027
        %v1051 = vpack.c.b16 %v1030, %v1029
        %v1052 = vpack.c.b16 %v1032, %v1031
        %v1053 = vpack.c.b16 %v1034, %v1033
        %v1054 = vpack.c.b16 %v1036, %v1035
        %v1055 = vpack.c.b16 %v1038, %v1037
        %v1056 = vpack.c.b16 %v1040, %v1039
        %1073 = vmatpush.bf16.msra.mxu0 %v1048
        %1074 = vmatpush.bf16.msra.mxu0 %v1047
        %1075 = vmatpush.bf16.msra.mxu0 %v1046
        %1076 = vmatpush.bf16.msra.mxu0 %v1045
        %1077 = vmatpush.bf16.msra.mxu0 %v1044
        %1078 = vmatpush.bf16.msra.mxu0 %v1043
        %1079 = vmatpush.bf16.msra.mxu0 %v1042
        %1080 = vmatpush.bf16.msra.mxu0 %v1041
        %1081 = vmatmul.bf16.gmra.mxu0 %v912
        %v1082 = vpop.f32.mrf.mxu0
        %v1083 = vadd.f32 %v976, %v1082
        %v1084 = vpop.f32.mrf.mxu0
        %v1085 = vadd.f32 %v976, %v1084
        %1086 = vmatmul.bf16.gmra.mxu0 %v914
        %v1087 = vpop.f32.mrf.mxu0
        %v1088 = vadd.f32 %v976, %v1087
        %v1089 = vpop.f32.mrf.mxu0
        %v1090 = vadd.f32 %v976, %v1089
        %1091 = vmatmul.bf16.gmra.mxu0 %v916
        %v1092 = vpop.f32.mrf.mxu0
        %v1093 = vadd.f32 %v976, %v1092
        %v1094 = vpop.f32.mrf.mxu0
        %v1095 = vadd.f32 %v976, %v1094
        %1096 = vmatmul.bf16.gmra.mxu0 %v918
        %v1097 = vpop.f32.mrf.mxu0
        %v1098 = vadd.f32 %v976, %v1097
        %v1099 = vpop.f32.mrf.mxu0
        %v1100 = vadd.f32 %v976, %v1099
        %1101 = vmatmul.bf16.gmra.mxu0 %v920
        %v1102 = vpop.f32.mrf.mxu0
        %v1103 = vadd.f32 %v976, %v1102
        %v1104 = vpop.f32.mrf.mxu0
        %v1105 = vadd.f32 %v976, %v1104
        %1106 = vmatmul.bf16.gmra.mxu0 %v922
        %v1107 = vpop.f32.mrf.mxu0
        %v1108 = vadd.f32 %v976, %v1107
        %v1109 = vpop.f32.mrf.mxu0
        %v1110 = vadd.f32 %v976, %v1109
        %1111 = vmatmul.bf16.gmra.mxu0 %v924
        %v1112 = vpop.f32.mrf.mxu0
        %v1113 = vadd.f32 %v976, %v1112
        %v1114 = vpop.f32.mrf.mxu0
        %v1115 = vadd.f32 %v976, %v1114
        %1116 = vmatmul.bf16.gmra.mxu0 %v926
        %v1117 = vpop.f32.mrf.mxu0
        %v1118 = vadd.f32 %v976, %v1117
        %v1119 = vpop.f32.mrf.mxu0
        %v1120 = vadd.f32 %v976, %v1119
        %1121 = vmatmul.bf16.gmra.mxu0 %v928
        %v1122 = vpop.f32.mrf.mxu0
        %v1123 = vadd.f32 %v976, %v1122
        %v1124 = vpop.f32.mrf.mxu0
        %v1125 = vadd.f32 %v976, %v1124
        %1126 = vmatmul.bf16.gmra.mxu0 %v930
        %v1127 = vpop.f32.mrf.mxu0
        %v1128 = vadd.f32 %v976, %v1127
        %v1129 = vpop.f32.mrf.mxu0
        %v1130 = vadd.f32 %v976, %v1129
        %1131 = vmatmul.bf16.gmra.mxu0 %v932
        %v1132 = vpop.f32.mrf.mxu0
        %v1133 = vadd.f32 %v976, %v1132
        %v1134 = vpop.f32.mrf.mxu0
        %v1135 = vadd.f32 %v976, %v1134
        %1136 = vmatmul.bf16.gmra.mxu0 %v934
        %v1137 = vpop.f32.mrf.mxu0
        %v1138 = vadd.f32 %v976, %v1137
        %v1139 = vpop.f32.mrf.mxu0
        %v1140 = vadd.f32 %v976, %v1139
        %1141 = vmatmul.bf16.gmra.mxu0 %v936
        %v1142 = vpop.f32.mrf.mxu0
        %v1143 = vadd.f32 %v976, %v1142
        %v1144 = vpop.f32.mrf.mxu0
        %v1145 = vadd.f32 %v976, %v1144
        %1146 = vmatmul.bf16.gmra.mxu0 %v938
        %v1147 = vpop.f32.mrf.mxu0
        %v1148 = vadd.f32 %v976, %v1147
        %v1149 = vpop.f32.mrf.mxu0
        %v1150 = vadd.f32 %v976, %v1149
        %1151 = vmatmul.bf16.gmra.mxu0 %v940
        %v1152 = vpop.f32.mrf.mxu0
        %v1153 = vadd.f32 %v976, %v1152
        %v1154 = vpop.f32.mrf.mxu0
        %v1155 = vadd.f32 %v976, %v1154
        %1156 = vmatmul.bf16.gmra.mxu0 %v942
        %v1157 = vpop.f32.mrf.mxu0
        %v1158 = vadd.f32 %v976, %v1157
        %v1159 = vpop.f32.mrf.mxu0
        %v1160 = vadd.f32 %v976, %v1159
        %1161 = vdwg.mxu0
        %1162 = vmatpush.bf16.msra.mxu0 %v1056
        %1163 = vmatpush.bf16.msra.mxu0 %v1055
        %1164 = vmatpush.bf16.msra.mxu0 %v1054
        %1165 = vmatpush.bf16.msra.mxu0 %v1053
        %1166 = vmatpush.bf16.msra.mxu0 %v1052
        %1167 = vmatpush.bf16.msra.mxu0 %v1051
        %1168 = vmatpush.bf16.msra.mxu0 %v1050
        %1169 = vmatpush.bf16.msra.mxu0 %v1049
        %1170 = vmatmul.bf16.gmra.mxu0 %v913
        %v1171 = vpop.f32.mrf.mxu0
        %v1172 = vadd.f32 %v1083, %v1171
        %v1173 = vpop.f32.mrf.mxu0
        %v1174 = vadd.f32 %v1085, %v1173
        %1175 = vmatmul.bf16.gmra.mxu0 %v915
        %v1176 = vpop.f32.mrf.mxu0
        %v1177 = vadd.f32 %v1088, %v1176
        %v1178 = vpop.f32.mrf.mxu0
        %v1179 = vadd.f32 %v1090, %v1178
        %1180 = vmatmul.bf16.gmra.mxu0 %v917
        %v1181 = vpop.f32.mrf.mxu0
        %v1182 = vadd.f32 %v1093, %v1181
        %v1183 = vpop.f32.mrf.mxu0
        %v1184 = vadd.f32 %v1095, %v1183
        %1185 = vmatmul.bf16.gmra.mxu0 %v919
        %v1186 = vpop.f32.mrf.mxu0
        %v1187 = vadd.f32 %v1098, %v1186
        %v1188 = vpop.f32.mrf.mxu0
        %v1189 = vadd.f32 %v1100, %v1188
        %1190 = vmatmul.bf16.gmra.mxu0 %v921
        %v1191 = vpop.f32.mrf.mxu0
        %v1192 = vadd.f32 %v1103, %v1191
        %v1193 = vpop.f32.mrf.mxu0
        %v1194 = vadd.f32 %v1105, %v1193
        %1195 = vmatmul.bf16.gmra.mxu0 %v923
        %v1196 = vpop.f32.mrf.mxu0
        %v1197 = vadd.f32 %v1108, %v1196
        %v1198 = vpop.f32.mrf.mxu0
        %v1199 = vadd.f32 %v1110, %v1198
        %1200 = vmatmul.bf16.gmra.mxu0 %v925
        %v1201 = vpop.f32.mrf.mxu0
        %v1202 = vadd.f32 %v1113, %v1201
        %v1203 = vpop.f32.mrf.mxu0
        %v1204 = vadd.f32 %v1115, %v1203
        %1205 = vmatmul.bf16.gmra.mxu0 %v927
        %v1206 = vpop.f32.mrf.mxu0
        %v1207 = vadd.f32 %v1118, %v1206
        %v1208 = vpop.f32.mrf.mxu0
        %v1209 = vadd.f32 %v1120, %v1208
        %1210 = vmatmul.bf16.gmra.mxu0 %v929
        %v1211 = vpop.f32.mrf.mxu0
        %v1212 = vadd.f32 %v1123, %v1211
        %v1213 = vpop.f32.mrf.mxu0
        %v1214 = vadd.f32 %v1125, %v1213
        %1215 = vmatmul.bf16.gmra.mxu0 %v931
        %v1216 = vpop.f32.mrf.mxu0
        %v1217 = vadd.f32 %v1128, %v1216
        %v1218 = vpop.f32.mrf.mxu0
        %v1219 = vadd.f32 %v1130, %v1218
        %1220 = vmatmul.bf16.gmra.mxu0 %v933
        %v1221 = vpop.f32.mrf.mxu0
        %v1222 = vadd.f32 %v1133, %v1221
        %v1223 = vpop.f32.mrf.mxu0
        %v1224 = vadd.f32 %v1135, %v1223
        %1225 = vmatmul.bf16.gmra.mxu0 %v935
        %v1226 = vpop.f32.mrf.mxu0
        %v1227 = vadd.f32 %v1138, %v1226
        %v1228 = vpop.f32.mrf.mxu0
        %v1229 = vadd.f32 %v1140, %v1228
        %1230 = vmatmul.bf16.gmra.mxu0 %v937
        %v1231 = vpop.f32.mrf.mxu0
        %v1232 = vadd.f32 %v1143, %v1231
        %v1233 = vpop.f32.mrf.mxu0
        %v1234 = vadd.f32 %v1145, %v1233
        %1235 = vmatmul.bf16.gmra.mxu0 %v939
        %v1236 = vpop.f32.mrf.mxu0
        %v1237 = vadd.f32 %v1148, %v1236
        %v1238 = vpop.f32.mrf.mxu0
        %v1239 = vadd.f32 %v1150, %v1238
        %1240 = vmatmul.bf16.gmra.mxu0 %v941
        %v1241 = vpop.f32.mrf.mxu0
        %v1242 = vadd.f32 %v1153, %v1241
        %v1243 = vpop.f32.mrf.mxu0
        %v1244 = vadd.f32 %v1155, %v1243
        %1245 = vmatmul.bf16.gmra.mxu0 %v943
        %v1246 = vpop.f32.mrf.mxu0
        %v1247 = vadd.f32 %v1158, %v1246
        %v1248 = vpop.f32.mrf.mxu0
        %v1249 = vadd.f32 %v1160, %v1248
        %1250 = vdwg.mxu0
        %v1251 = vmax.f32 %v1172, 0.0
        %v1252 = vmax.f32 %v1174, 0.0
        %v1253 = vmax.f32 %v1177, 0.0
        %v1254 = vmax.f32 %v1179, 0.0
        %v1255 = vmax.f32 %v1182, 0.0
        %v1256 = vmax.f32 %v1184, 0.0
        %v1257 = vmax.f32 %v1187, 0.0
        %v1258 = vmax.f32 %v1189, 0.0
        %v1259 = vmax.f32 %v1192, 0.0
        %v1260 = vmax.f32 %v1194, 0.0
        %v1261 = vmax.f32 %v1197, 0.0
        %v1262 = vmax.f32 %v1199, 0.0
        %v1263 = vmax.f32 %v1202, 0.0
        %v1264 = vmax.f32 %v1204, 0.0
        %v1265 = vmax.f32 %v1207, 0.0
        %v1266 = vmax.f32 %v1209, 0.0
        %v1267 = vmax.f32 %v1212, 0.0
        %v1268 = vmax.f32 %v1214, 0.0
        %v1269 = vmax.f32 %v1217, 0.0
        %v1270 = vmax.f32 %v1219, 0.0
        %v1271 = vmax.f32 %v1222, 0.0
        %v1272 = vmax.f32 %v1224, 0.0
        %v1273 = vmax.f32 %v1227, 0.0
        %v1274 = vmax.f32 %v1229, 0.0
        %v1275 = vmax.f32 %v1232, 0.0
        %v1276 = vmax.f32 %v1234, 0.0
        %v1277 = vmax.f32 %v1237, 0.0
        %v1278 = vmax.f32 %v1239, 0.0
        %v1279 = vmax.f32 %v1242, 0.0
        %v1280 = vmax.f32 %v1244, 0.0
        %v1281 = vmax.f32 %v1247, 0.0
        %v1282 = vmax.f32 %v1249, 0.0
        %v1283 = vpack.c.bf16 %v1252, %v1251
        %v1284 = vpack.c.bf16 %v1254, %v1253
        %v1285 = vpack.c.bf16 %v1256, %v1255
        %v1286 = vpack.c.bf16 %v1258, %v1257
        %v1287 = vpack.c.bf16 %v1260, %v1259
        %v1288 = vpack.c.bf16 %v1262, %v1261
        %v1289 = vpack.c.bf16 %v1264, %v1263
        %v1290 = vpack.c.bf16 %v1266, %v1265
        %v1291 = vpack.c.bf16 %v1268, %v1267
        %v1292 = vpack.c.bf16 %v1270, %v1269
        %v1293 = vpack.c.bf16 %v1272, %v1271
        %v1294 = vpack.c.bf16 %v1274, %v1273
        %v1295 = vpack.c.bf16 %v1276, %v1275
        %v1296 = vpack.c.bf16 %v1278, %v1277
        %v1297 = vpack.c.bf16 %v1280, %v1279
        %v1298 = vpack.c.bf16 %v1282, %v1281
        %v1299 = vld [vmem:[#allocation8] sm:$0xf]
        %v1300 = vld [vmem:[#allocation8 + $0x4] sm:$0xf]
        %v1301 = vld [vmem:[#allocation8 + $0x8] sm:$0xf]
        %v1302 = vld [vmem:[#allocation8 + $0xc] sm:$0xf]
        %v1303 = vld [vmem:[#allocation8 + $0x10] sm:$0xf]
        %v1304 = vld [vmem:[#allocation8 + $0x14] sm:$0xf]
        %v1305 = vld [vmem:[#allocation8 + $0x18] sm:$0xf]
        %v1306 = vld [vmem:[#allocation8 + $0x1c] sm:$0xf]
        %v1307 = vld [vmem:[#allocation8 + $0x20] sm:$0xf]
        %v1308 = vld [vmem:[#allocation8 + $0x24] sm:$0xf]
        %v1309 = vld [vmem:[#allocation8 + $0x28] sm:$0xf]
        %v1310 = vld [vmem:[#allocation8 + $0x2c] sm:$0xf]
        %v1311 = vld [vmem:[#allocation8 + $0x30] sm:$0xf]
        %v1312 = vld [vmem:[#allocation8 + $0x34] sm:$0xf]
        %v1313 = vld [vmem:[#allocation8 + $0x38] sm:$0xf]
        %v1314 = vld [vmem:[#allocation8 + $0x3c] sm:$0xf]
        %v1315 = vld [vmem:[#allocation14 + $0x2] ss:$0 sm:$0xff]
        %v1332 = vunpack.c.l.b16 %v1299
        %v1333 = vunpack.c.l.b16 %v1300
        %v1334 = vunpack.c.l.b16 %v1301
        %v1335 = vunpack.c.l.b16 %v1302
        %v1336 = vunpack.c.l.b16 %v1303
        %v1337 = vunpack.c.l.b16 %v1304
        %v1338 = vunpack.c.l.b16 %v1305
        %v1339 = vunpack.c.l.b16 %v1306
        %v1340 = vunpack.c.l.b16 %v1307
        %v1341 = vunpack.c.l.b16 %v1308
        %v1342 = vunpack.c.l.b16 %v1309
        %v1343 = vunpack.c.l.b16 %v1310
        %v1344 = vunpack.c.l.b16 %v1311
        %v1345 = vunpack.c.l.b16 %v1312
        %v1346 = vunpack.c.l.b16 %v1313
        %v1347 = vunpack.c.l.b16 %v1314
        %v1348 = vpack.c.b16 %v1333, %v1332
        %v1349 = vpack.c.b16 %v1335, %v1334
        %v1350 = vpack.c.b16 %v1337, %v1336
        %v1351 = vpack.c.b16 %v1339, %v1338
        %v1352 = vpack.c.b16 %v1341, %v1340
        %v1353 = vpack.c.b16 %v1343, %v1342
        %v1354 = vpack.c.b16 %v1345, %v1344
        %v1355 = vpack.c.b16 %v1347, %v1346
        %1364 = vmatpush.bf16.msra.mxu0 %v1355
        %1365 = vmatpush.bf16.msra.mxu0 %v1354
        %1366 = vmatpush.bf16.msra.mxu0 %v1353
        %1367 = vmatpush.bf16.msra.mxu0 %v1352
        %1368 = vmatpush.bf16.msra.mxu0 %v1351
        %1369 = vmatpush.bf16.msra.mxu0 %v1350
        %1370 = vmatpush.bf16.msra.mxu0 %v1349
        %1371 = vmatpush.bf16.msra.mxu0 %v1348
        %1372 = vmatmul.bf16.gmra.mxu0 %v1283
        %v1373 = vpop.f32.mrf.mxu0
        %v1374 = vadd.f32 %v1315, %v1373
        %v1375 = vpop.f32.mrf.mxu0
        %v1376 = vadd.f32 %v1315, %v1375
        %1377 = vmatmul.bf16.gmra.mxu0 %v1284
        %v1378 = vpop.f32.mrf.mxu0
        %v1379 = vadd.f32 %v1315, %v1378
        %v1380 = vpop.f32.mrf.mxu0
        %v1381 = vadd.f32 %v1315, %v1380
        %1382 = vmatmul.bf16.gmra.mxu0 %v1285
        %v1383 = vpop.f32.mrf.mxu0
        %v1384 = vadd.f32 %v1315, %v1383
        %v1385 = vpop.f32.mrf.mxu0
        %v1386 = vadd.f32 %v1315, %v1385
        %1387 = vmatmul.bf16.gmra.mxu0 %v1286
        %v1388 = vpop.f32.mrf.mxu0
        %v1389 = vadd.f32 %v1315, %v1388
        %v1390 = vpop.f32.mrf.mxu0
        %v1391 = vadd.f32 %v1315, %v1390
        %1392 = vmatmul.bf16.gmra.mxu0 %v1287
        %v1393 = vpop.f32.mrf.mxu0
        %v1394 = vadd.f32 %v1315, %v1393
        %v1395 = vpop.f32.mrf.mxu0
        %v1396 = vadd.f32 %v1315, %v1395
        %1397 = vmatmul.bf16.gmra.mxu0 %v1288
        %v1398 = vpop.f32.mrf.mxu0
        %v1399 = vadd.f32 %v1315, %v1398
        %v1400 = vpop.f32.mrf.mxu0
        %v1401 = vadd.f32 %v1315, %v1400
        %1402 = vmatmul.bf16.gmra.mxu0 %v1289
        %v1403 = vpop.f32.mrf.mxu0
        %v1404 = vadd.f32 %v1315, %v1403
        %v1405 = vpop.f32.mrf.mxu0
        %v1406 = vadd.f32 %v1315, %v1405
        %1407 = vmatmul.bf16.gmra.mxu0 %v1290
        %v1408 = vpop.f32.mrf.mxu0
        %v1409 = vadd.f32 %v1315, %v1408
        %v1410 = vpop.f32.mrf.mxu0
        %v1411 = vadd.f32 %v1315, %v1410
        %1412 = vmatmul.bf16.gmra.mxu0 %v1291
        %v1413 = vpop.f32.mrf.mxu0
        %v1414 = vadd.f32 %v1315, %v1413
        %v1415 = vpop.f32.mrf.mxu0
        %v1416 = vadd.f32 %v1315, %v1415
        %1417 = vmatmul.bf16.gmra.mxu0 %v1292
        %v1418 = vpop.f32.mrf.mxu0
        %v1419 = vadd.f32 %v1315, %v1418
        %v1420 = vpop.f32.mrf.mxu0
        %v1421 = vadd.f32 %v1315, %v1420
        %1422 = vmatmul.bf16.gmra.mxu0 %v1293
        %v1423 = vpop.f32.mrf.mxu0
        %v1424 = vadd.f32 %v1315, %v1423
        %v1425 = vpop.f32.mrf.mxu0
        %v1426 = vadd.f32 %v1315, %v1425
        %1427 = vmatmul.bf16.gmra.mxu0 %v1294
        %v1428 = vpop.f32.mrf.mxu0
        %v1429 = vadd.f32 %v1315, %v1428
        %v1430 = vpop.f32.mrf.mxu0
        %v1431 = vadd.f32 %v1315, %v1430
        %1432 = vmatmul.bf16.gmra.mxu0 %v1295
        %v1433 = vpop.f32.mrf.mxu0
        %v1434 = vadd.f32 %v1315, %v1433
        %v1435 = vpop.f32.mrf.mxu0
        %v1436 = vadd.f32 %v1315, %v1435
        %1437 = vmatmul.bf16.gmra.mxu0 %v1296
        %v1438 = vpop.f32.mrf.mxu0
        %v1439 = vadd.f32 %v1315, %v1438
        %v1440 = vpop.f32.mrf.mxu0
        %v1441 = vadd.f32 %v1315, %v1440
        %1442 = vmatmul.bf16.gmra.mxu0 %v1297
        %v1443 = vpop.f32.mrf.mxu0
        %v1444 = vadd.f32 %v1315, %v1443
        %v1445 = vpop.f32.mrf.mxu0
        %v1446 = vadd.f32 %v1315, %v1445
        %1447 = vmatmul.bf16.gmra.mxu0 %v1298
        %v1448 = vpop.f32.mrf.mxu0
        %v1449 = vadd.f32 %v1315, %v1448
        %v1450 = vpop.f32.mrf.mxu0
        %v1451 = vadd.f32 %v1315, %v1450
        %1452 = vdwg.mxu0
        %v1453 = vmax.f32 %v1374, 0.0
        %v1454 = vmax.f32 %v1376, 0.0
        %v1455 = vmax.f32 %v1379, 0.0
        %v1456 = vmax.f32 %v1381, 0.0
        %v1457 = vmax.f32 %v1384, 0.0
        %v1458 = vmax.f32 %v1386, 0.0
        %v1459 = vmax.f32 %v1389, 0.0
        %v1460 = vmax.f32 %v1391, 0.0
        %v1461 = vmax.f32 %v1394, 0.0
        %v1462 = vmax.f32 %v1396, 0.0
        %v1463 = vmax.f32 %v1399, 0.0
        %v1464 = vmax.f32 %v1401, 0.0
        %v1465 = vmax.f32 %v1404, 0.0
        %v1466 = vmax.f32 %v1406, 0.0
        %v1467 = vmax.f32 %v1409, 0.0
        %v1468 = vmax.f32 %v1411, 0.0
        %v1469 = vmax.f32 %v1414, 0.0
        %v1470 = vmax.f32 %v1416, 0.0
        %v1471 = vmax.f32 %v1419, 0.0
        %v1472 = vmax.f32 %v1421, 0.0
        %v1473 = vmax.f32 %v1424, 0.0
        %v1474 = vmax.f32 %v1426, 0.0
        %v1475 = vmax.f32 %v1429, 0.0
        %v1476 = vmax.f32 %v1431, 0.0
        %v1477 = vmax.f32 %v1434, 0.0
        %v1478 = vmax.f32 %v1436, 0.0
        %v1479 = vmax.f32 %v1439, 0.0
        %v1480 = vmax.f32 %v1441, 0.0
        %v1481 = vmax.f32 %v1444, 0.0
        %v1482 = vmax.f32 %v1446, 0.0
        %v1483 = vmax.f32 %v1449, 0.0
        %v1484 = vmax.f32 %v1451, 0.0
        %v1485 = vpack.c.bf16 %v1454, %v1453
        %v1486 = vpack.c.bf16 %v1456, %v1455
        %v1487 = vpack.c.bf16 %v1458, %v1457
        %v1488 = vpack.c.bf16 %v1460, %v1459
        %v1489 = vpack.c.bf16 %v1462, %v1461
        %v1490 = vpack.c.bf16 %v1464, %v1463
        %v1491 = vpack.c.bf16 %v1466, %v1465
        %v1492 = vpack.c.bf16 %v1468, %v1467
        %v1493 = vpack.c.bf16 %v1470, %v1469
        %v1494 = vpack.c.bf16 %v1472, %v1471
        %v1495 = vpack.c.bf16 %v1474, %v1473
        %v1496 = vpack.c.bf16 %v1476, %v1475
        %v1497 = vpack.c.bf16 %v1478, %v1477
        %v1498 = vpack.c.bf16 %v1480, %v1479
        %v1499 = vpack.c.bf16 %v1482, %v1481
        %v1500 = vpack.c.bf16 %v1484, %v1483
        %v1501 = vld [vmem:[#allocation10] sm:$0xf]
        %v1502 = vld [vmem:[#allocation10 + $0x4] sm:$0xf]
        %v1503 = vld [vmem:[#allocation10 + $0x8] sm:$0xf]
        %v1504 = vld [vmem:[#allocation10 + $0xc] sm:$0xf]
        %v1505 = vld [vmem:[#allocation10 + $0x10] sm:$0xf]
        %v1506 = vld [vmem:[#allocation10 + $0x14] sm:$0xf]
        %v1507 = vld [vmem:[#allocation10 + $0x18] sm:$0xf]
        %v1508 = vld [vmem:[#allocation10 + $0x1c] sm:$0xf]
        %v1509 = vld [vmem:[#allocation10 + $0x20] sm:$0xf]
        %v1510 = vld [vmem:[#allocation10 + $0x24] sm:$0xf]
        %v1511 = vld [vmem:[#allocation10 + $0x28] sm:$0xf]
        %v1512 = vld [vmem:[#allocation10 + $0x2c] sm:$0xf]
        %v1513 = vld [vmem:[#allocation10 + $0x30] sm:$0xf]
        %v1514 = vld [vmem:[#allocation10 + $0x34] sm:$0xf]
        %v1515 = vld [vmem:[#allocation10 + $0x38] sm:$0xf]
        %v1516 = vld [vmem:[#allocation10 + $0x3c] sm:$0xf]
        %v1517 = vld [vmem:[#allocation14 + $0x3] ss:$0 sm:$0xff]
        %v1534 = vunpack.c.l.b16 %v1501
        %v1535 = vunpack.c.l.b16 %v1502
        %v1536 = vunpack.c.l.b16 %v1503
        %v1537 = vunpack.c.l.b16 %v1504
        %v1538 = vunpack.c.l.b16 %v1505
        %v1539 = vunpack.c.l.b16 %v1506
        %v1540 = vunpack.c.l.b16 %v1507
        %v1541 = vunpack.c.l.b16 %v1508
        %v1542 = vunpack.c.l.b16 %v1509
        %v1543 = vunpack.c.l.b16 %v1510
        %v1544 = vunpack.c.l.b16 %v1511
        %v1545 = vunpack.c.l.b16 %v1512
        %v1546 = vunpack.c.l.b16 %v1513
        %v1547 = vunpack.c.l.b16 %v1514
        %v1548 = vunpack.c.l.b16 %v1515
        %v1549 = vunpack.c.l.b16 %v1516
        %v1550 = vpack.c.b16 %v1535, %v1534
        %v1551 = vpack.c.b16 %v1537, %v1536
        %v1552 = vpack.c.b16 %v1539, %v1538
        %v1553 = vpack.c.b16 %v1541, %v1540
        %v1554 = vpack.c.b16 %v1543, %v1542
        %v1555 = vpack.c.b16 %v1545, %v1544
        %v1556 = vpack.c.b16 %v1547, %v1546
        %v1557 = vpack.c.b16 %v1549, %v1548
        %1566 = vmatpush.bf16.msra.mxu0 %v1557
        %1567 = vmatpush.bf16.msra.mxu0 %v1556
        %1568 = vmatpush.bf16.msra.mxu0 %v1555
        %1569 = vmatpush.bf16.msra.mxu0 %v1554
        %1570 = vmatpush.bf16.msra.mxu0 %v1553
        %1571 = vmatpush.bf16.msra.mxu0 %v1552
        %1572 = vmatpush.bf16.msra.mxu0 %v1551
        %1573 = vmatpush.bf16.msra.mxu0 %v1550
        %1574 = vmatmul.bf16.gmra.mxu0 %v1485
        %v1575 = vpop.f32.mrf.mxu0
        %v1576 = vadd.f32 %v1517, %v1575
        %v1577 = vpop.f32.mrf.mxu0
        %v1578 = vadd.f32 %v1517, %v1577
        %1579 = vmatmul.bf16.gmra.mxu0 %v1486
        %v1580 = vpop.f32.mrf.mxu0
        %v1581 = vadd.f32 %v1517, %v1580
        %v1582 = vpop.f32.mrf.mxu0
        %v1583 = vadd.f32 %v1517, %v1582
        %1584 = vmatmul.bf16.gmra.mxu0 %v1487
        %v1585 = vpop.f32.mrf.mxu0
        %v1586 = vadd.f32 %v1517, %v1585
        %v1587 = vpop.f32.mrf.mxu0
        %v1588 = vadd.f32 %v1517, %v1587
        %1589 = vmatmul.bf16.gmra.mxu0 %v1488
        %v1590 = vpop.f32.mrf.mxu0
        %v1591 = vadd.f32 %v1517, %v1590
        %v1592 = vpop.f32.mrf.mxu0
        %v1593 = vadd.f32 %v1517, %v1592
        %1594 = vmatmul.bf16.gmra.mxu0 %v1489
        %v1595 = vpop.f32.mrf.mxu0
        %v1596 = vadd.f32 %v1517, %v1595
        %v1597 = vpop.f32.mrf.mxu0
        %v1598 = vadd.f32 %v1517, %v1597
        %1599 = vmatmul.bf16.gmra.mxu0 %v1490
        %v1600 = vpop.f32.mrf.mxu0
        %v1601 = vadd.f32 %v1517, %v1600
        %v1602 = vpop.f32.mrf.mxu0
        %v1603 = vadd.f32 %v1517, %v1602
        %1604 = vmatmul.bf16.gmra.mxu0 %v1491
        %v1605 = vpop.f32.mrf.mxu0
        %v1606 = vadd.f32 %v1517, %v1605
        %v1607 = vpop.f32.mrf.mxu0
        %v1608 = vadd.f32 %v1517, %v1607
        %1609 = vmatmul.bf16.gmra.mxu0 %v1492
        %v1610 = vpop.f32.mrf.mxu0
        %v1611 = vadd.f32 %v1517, %v1610
        %v1612 = vpop.f32.mrf.mxu0
        %v1613 = vadd.f32 %v1517, %v1612
        %1614 = vmatmul.bf16.gmra.mxu0 %v1493
        %v1615 = vpop.f32.mrf.mxu0
        %v1616 = vadd.f32 %v1517, %v1615
        %v1617 = vpop.f32.mrf.mxu0
        %v1618 = vadd.f32 %v1517, %v1617
        %1619 = vmatmul.bf16.gmra.mxu0 %v1494
        %v1620 = vpop.f32.mrf.mxu0
        %v1621 = vadd.f32 %v1517, %v1620
        %v1622 = vpop.f32.mrf.mxu0
        %v1623 = vadd.f32 %v1517, %v1622
        %1624 = vmatmul.bf16.gmra.mxu0 %v1495
        %v1625 = vpop.f32.mrf.mxu0
        %v1626 = vadd.f32 %v1517, %v1625
        %v1627 = vpop.f32.mrf.mxu0
        %v1628 = vadd.f32 %v1517, %v1627
        %1629 = vmatmul.bf16.gmra.mxu0 %v1496
        %v1630 = vpop.f32.mrf.mxu0
        %v1631 = vadd.f32 %v1517, %v1630
        %v1632 = vpop.f32.mrf.mxu0
        %v1633 = vadd.f32 %v1517, %v1632
        %1634 = vmatmul.bf16.gmra.mxu0 %v1497
        %v1635 = vpop.f32.mrf.mxu0
        %v1636 = vadd.f32 %v1517, %v1635
        %v1637 = vpop.f32.mrf.mxu0
        %v1638 = vadd.f32 %v1517, %v1637
        %1639 = vmatmul.bf16.gmra.mxu0 %v1498
        %v1640 = vpop.f32.mrf.mxu0
        %v1641 = vadd.f32 %v1517, %v1640
        %v1642 = vpop.f32.mrf.mxu0
        %v1643 = vadd.f32 %v1517, %v1642
        %1644 = vmatmul.bf16.gmra.mxu0 %v1499
        %v1645 = vpop.f32.mrf.mxu0
        %v1646 = vadd.f32 %v1517, %v1645
        %v1647 = vpop.f32.mrf.mxu0
        %v1648 = vadd.f32 %v1517, %v1647
        %1649 = vmatmul.bf16.gmra.mxu0 %v1500
        %v1650 = vpop.f32.mrf.mxu0
        %v1651 = vadd.f32 %v1517, %v1650
        %v1652 = vpop.f32.mrf.mxu0
        %v1653 = vadd.f32 %v1517, %v1652
        %1654 = vdwg.mxu0
        %v1655 = vmax.f32 %v1576, 0.0
        %v1656 = vmax.f32 %v1578, 0.0
        %v1657 = vmax.f32 %v1581, 0.0
        %v1658 = vmax.f32 %v1583, 0.0
        %v1659 = vmax.f32 %v1586, 0.0
        %v1660 = vmax.f32 %v1588, 0.0
        %v1661 = vmax.f32 %v1591, 0.0
        %v1662 = vmax.f32 %v1593, 0.0
        %v1663 = vmax.f32 %v1596, 0.0
        %v1664 = vmax.f32 %v1598, 0.0
        %v1665 = vmax.f32 %v1601, 0.0
        %v1666 = vmax.f32 %v1603, 0.0
        %v1667 = vmax.f32 %v1606, 0.0
        %v1668 = vmax.f32 %v1608, 0.0
        %v1669 = vmax.f32 %v1611, 0.0
        %v1670 = vmax.f32 %v1613, 0.0
        %v1671 = vmax.f32 %v1616, 0.0
        %v1672 = vmax.f32 %v1618, 0.0
        %v1673 = vmax.f32 %v1621, 0.0
        %v1674 = vmax.f32 %v1623, 0.0
        %v1675 = vmax.f32 %v1626, 0.0
        %v1676 = vmax.f32 %v1628, 0.0
        %v1677 = vmax.f32 %v1631, 0.0
        %v1678 = vmax.f32 %v1633, 0.0
        %v1679 = vmax.f32 %v1636, 0.0
        %v1680 = vmax.f32 %v1638, 0.0
        %v1681 = vmax.f32 %v1641, 0.0
        %v1682 = vmax.f32 %v1643, 0.0
        %v1683 = vmax.f32 %v1646, 0.0
        %v1684 = vmax.f32 %v1648, 0.0
        %v1685 = vmax.f32 %v1651, 0.0
        %v1686 = vmax.f32 %v1653, 0.0
        %v1687 = vpack.c.bf16 %v1656, %v1655
        %v1688 = vpack.c.bf16 %v1658, %v1657
        %v1689 = vpack.c.bf16 %v1660, %v1659
        %v1690 = vpack.c.bf16 %v1662, %v1661
        %v1691 = vpack.c.bf16 %v1664, %v1663
        %v1692 = vpack.c.bf16 %v1666, %v1665
        %v1693 = vpack.c.bf16 %v1668, %v1667
        %v1694 = vpack.c.bf16 %v1670, %v1669
        %v1695 = vpack.c.bf16 %v1672, %v1671
        %v1696 = vpack.c.bf16 %v1674, %v1673
        %v1697 = vpack.c.bf16 %v1676, %v1675
        %v1698 = vpack.c.bf16 %v1678, %v1677
        %v1699 = vpack.c.bf16 %v1680, %v1679
        %v1700 = vpack.c.bf16 %v1682, %v1681
        %v1701 = vpack.c.bf16 %v1684, %v1683
        %v1702 = vpack.c.bf16 %v1686, %v1685
        %v1703 = vld [vmem:[#allocation11] sm:$0xf]
        %v1704 = vld [vmem:[#allocation11 + $0x4] sm:$0xf]
        %v1705 = vld [vmem:[#allocation11 + $0x8] sm:$0xf]
        %v1706 = vld [vmem:[#allocation11 + $0xc] sm:$0xf]
        %v1707 = vld [vmem:[#allocation11 + $0x10] sm:$0xf]
        %v1708 = vld [vmem:[#allocation11 + $0x14] sm:$0xf]
        %v1709 = vld [vmem:[#allocation11 + $0x18] sm:$0xf]
        %v1710 = vld [vmem:[#allocation11 + $0x1c] sm:$0xf]
        %v1711 = vld [vmem:[#allocation11 + $0x20] sm:$0xf]
        %v1712 = vld [vmem:[#allocation11 + $0x24] sm:$0xf]
        %v1713 = vld [vmem:[#allocation11 + $0x28] sm:$0xf]
        %v1714 = vld [vmem:[#allocation11 + $0x2c] sm:$0xf]
        %v1715 = vld [vmem:[#allocation11 + $0x30] sm:$0xf]
        %v1716 = vld [vmem:[#allocation11 + $0x34] sm:$0xf]
        %v1717 = vld [vmem:[#allocation11 + $0x38] sm:$0xf]
        %v1718 = vld [vmem:[#allocation11 + $0x3c] sm:$0xf]
        %v1719 = vld [vmem:[#allocation14 + $0x4] ss:$0 sm:$0xff]
        %v1736 = vunpack.c.l.b16 %v1703
        %v1737 = vunpack.c.l.b16 %v1704
        %v1738 = vunpack.c.l.b16 %v1705
        %v1739 = vunpack.c.l.b16 %v1706
        %v1740 = vunpack.c.l.b16 %v1707
        %v1741 = vunpack.c.l.b16 %v1708
        %v1742 = vunpack.c.l.b16 %v1709
        %v1743 = vunpack.c.l.b16 %v1710
        %v1744 = vunpack.c.l.b16 %v1711
        %v1745 = vunpack.c.l.b16 %v1712
        %v1746 = vunpack.c.l.b16 %v1713
        %v1747 = vunpack.c.l.b16 %v1714
        %v1748 = vunpack.c.l.b16 %v1715
        %v1749 = vunpack.c.l.b16 %v1716
        %v1750 = vunpack.c.l.b16 %v1717
        %v1751 = vunpack.c.l.b16 %v1718
        %v1752 = vpack.c.b16 %v1737, %v1736
        %v1753 = vpack.c.b16 %v1739, %v1738
        %v1754 = vpack.c.b16 %v1741, %v1740
        %v1755 = vpack.c.b16 %v1743, %v1742
        %v1756 = vpack.c.b16 %v1745, %v1744
        %v1757 = vpack.c.b16 %v1747, %v1746
        %v1758 = vpack.c.b16 %v1749, %v1748
        %v1759 = vpack.c.b16 %v1751, %v1750
        %1768 = vmatpush.bf16.msra.mxu0 %v1759
        %1769 = vmatpush.bf16.msra.mxu0 %v1758
        %1770 = vmatpush.bf16.msra.mxu0 %v1757
        %1771 = vmatpush.bf16.msra.mxu0 %v1756
        %1772 = vmatpush.bf16.msra.mxu0 %v1755
        %1773 = vmatpush.bf16.msra.mxu0 %v1754
        %1774 = vmatpush.bf16.msra.mxu0 %v1753
        %1775 = vmatpush.bf16.msra.mxu0 %v1752
        %1776 = vmatmul.bf16.gmra.mxu0 %v1687
        %v1777 = vpop.f32.mrf.mxu0
        %v1778 = vadd.f32 %v1719, %v1777
        %v1779 = vpop.f32.mrf.mxu0
        %v1780 = vadd.f32 %v1719, %v1779
        %1781 = vmatmul.bf16.gmra.mxu0 %v1688
        %v1782 = vpop.f32.mrf.mxu0
        %v1783 = vadd.f32 %v1719, %v1782
        %v1784 = vpop.f32.mrf.mxu0
        %v1785 = vadd.f32 %v1719, %v1784
        %1786 = vmatmul.bf16.gmra.mxu0 %v1689
        %v1787 = vpop.f32.mrf.mxu0
        %v1788 = vadd.f32 %v1719, %v1787
        %v1789 = vpop.f32.mrf.mxu0
        %v1790 = vadd.f32 %v1719, %v1789
        %1791 = vmatmul.bf16.gmra.mxu0 %v1690
        %v1792 = vpop.f32.mrf.mxu0
        %v1793 = vadd.f32 %v1719, %v1792
        %v1794 = vpop.f32.mrf.mxu0
        %v1795 = vadd.f32 %v1719, %v1794
        %1796 = vmatmul.bf16.gmra.mxu0 %v1691
        %v1797 = vpop.f32.mrf.mxu0
        %v1798 = vadd.f32 %v1719, %v1797
        %v1799 = vpop.f32.mrf.mxu0
        %v1800 = vadd.f32 %v1719, %v1799
        %1801 = vmatmul.bf16.gmra.mxu0 %v1692
        %v1802 = vpop.f32.mrf.mxu0
        %v1803 = vadd.f32 %v1719, %v1802
        %v1804 = vpop.f32.mrf.mxu0
        %v1805 = vadd.f32 %v1719, %v1804
        %1806 = vmatmul.bf16.gmra.mxu0 %v1693
        %v1807 = vpop.f32.mrf.mxu0
        %v1808 = vadd.f32 %v1719, %v1807
        %v1809 = vpop.f32.mrf.mxu0
        %v1810 = vadd.f32 %v1719, %v1809
        %1811 = vmatmul.bf16.gmra.mxu0 %v1694
        %v1812 = vpop.f32.mrf.mxu0
        %v1813 = vadd.f32 %v1719, %v1812
        %v1814 = vpop.f32.mrf.mxu0
        %v1815 = vadd.f32 %v1719, %v1814
        %1816 = vmatmul.bf16.gmra.mxu0 %v1695
        %v1817 = vpop.f32.mrf.mxu0
        %v1818 = vadd.f32 %v1719, %v1817
        %v1819 = vpop.f32.mrf.mxu0
        %v1820 = vadd.f32 %v1719, %v1819
        %1821 = vmatmul.bf16.gmra.mxu0 %v1696
        %v1822 = vpop.f32.mrf.mxu0
        %v1823 = vadd.f32 %v1719, %v1822
        %v1824 = vpop.f32.mrf.mxu0
        %v1825 = vadd.f32 %v1719, %v1824
        %1826 = vmatmul.bf16.gmra.mxu0 %v1697
        %v1827 = vpop.f32.mrf.mxu0
        %v1828 = vadd.f32 %v1719, %v1827
        %v1829 = vpop.f32.mrf.mxu0
        %v1830 = vadd.f32 %v1719, %v1829
        %1831 = vmatmul.bf16.gmra.mxu0 %v1698
        %v1832 = vpop.f32.mrf.mxu0
        %v1833 = vadd.f32 %v1719, %v1832
        %v1834 = vpop.f32.mrf.mxu0
        %v1835 = vadd.f32 %v1719, %v1834
        %1836 = vmatmul.bf16.gmra.mxu0 %v1699
        %v1837 = vpop.f32.mrf.mxu0
        %v1838 = vadd.f32 %v1719, %v1837
        %v1839 = vpop.f32.mrf.mxu0
        %v1840 = vadd.f32 %v1719, %v1839
        %1841 = vmatmul.bf16.gmra.mxu0 %v1700
        %v1842 = vpop.f32.mrf.mxu0
        %v1843 = vadd.f32 %v1719, %v1842
        %v1844 = vpop.f32.mrf.mxu0
        %v1845 = vadd.f32 %v1719, %v1844
        %1846 = vmatmul.bf16.gmra.mxu0 %v1701
        %v1847 = vpop.f32.mrf.mxu0
        %v1848 = vadd.f32 %v1719, %v1847
        %v1849 = vpop.f32.mrf.mxu0
        %v1850 = vadd.f32 %v1719, %v1849
        %1851 = vmatmul.bf16.gmra.mxu0 %v1702
        %v1852 = vpop.f32.mrf.mxu0
        %v1853 = vadd.f32 %v1719, %v1852
        %v1854 = vpop.f32.mrf.mxu0
        %v1855 = vadd.f32 %v1719, %v1854
        %1856 = vdwg.mxu0
        %v1857 = vmax.f32 %v1778, 0.0
        %v1858 = vmax.f32 %v1780, 0.0
        %v1859 = vmax.f32 %v1783, 0.0
        %v1860 = vmax.f32 %v1785, 0.0
        %v1861 = vmax.f32 %v1788, 0.0
        %v1862 = vmax.f32 %v1790, 0.0
        %v1863 = vmax.f32 %v1793, 0.0
        %v1864 = vmax.f32 %v1795, 0.0
        %v1865 = vmax.f32 %v1798, 0.0
        %v1866 = vmax.f32 %v1800, 0.0
        %v1867 = vmax.f32 %v1803, 0.0
        %v1868 = vmax.f32 %v1805, 0.0
        %v1869 = vmax.f32 %v1808, 0.0
        %v1870 = vmax.f32 %v1810, 0.0
        %v1871 = vmax.f32 %v1813, 0.0
        %v1872 = vmax.f32 %v1815, 0.0
        %v1873 = vmax.f32 %v1818, 0.0
        %v1874 = vmax.f32 %v1820, 0.0
        %v1875 = vmax.f32 %v1823, 0.0
        %v1876 = vmax.f32 %v1825, 0.0
        %v1877 = vmax.f32 %v1828, 0.0
        %v1878 = vmax.f32 %v1830, 0.0
        %v1879 = vmax.f32 %v1833, 0.0
        %v1880 = vmax.f32 %v1835, 0.0
        %v1881 = vmax.f32 %v1838, 0.0
        %v1882 = vmax.f32 %v1840, 0.0
        %v1883 = vmax.f32 %v1843, 0.0
        %v1884 = vmax.f32 %v1845, 0.0
        %v1885 = vmax.f32 %v1848, 0.0
        %v1886 = vmax.f32 %v1850, 0.0
        %v1887 = vmax.f32 %v1853, 0.0
        %v1888 = vmax.f32 %v1855, 0.0
        %v1889 = vpack.c.bf16 %v1858, %v1857
        %v1890 = vpack.c.bf16 %v1860, %v1859
        %v1891 = vpack.c.bf16 %v1862, %v1861
        %v1892 = vpack.c.bf16 %v1864, %v1863
        %v1893 = vpack.c.bf16 %v1866, %v1865
        %v1894 = vpack.c.bf16 %v1868, %v1867
        %v1895 = vpack.c.bf16 %v1870, %v1869
        %v1896 = vpack.c.bf16 %v1872, %v1871
        %v1897 = vpack.c.bf16 %v1874, %v1873
        %v1898 = vpack.c.bf16 %v1876, %v1875
        %v1899 = vpack.c.bf16 %v1878, %v1877
        %v1900 = vpack.c.bf16 %v1880, %v1879
        %v1901 = vpack.c.bf16 %v1882, %v1881
        %v1902 = vpack.c.bf16 %v1884, %v1883
        %v1903 = vpack.c.bf16 %v1886, %v1885
        %v1904 = vpack.c.bf16 %v1888, %v1887
        %v1905 = vld [vmem:[#allocation13] sm:$0xff]
        %v1906 = vunpack.c.l.bf16 %v1889
        %v1907 = vunpack.c.h.bf16 %v1889
        %v1908 = vunpack.c.l.bf16 %v1890
        %v1909 = vunpack.c.h.bf16 %v1890
        %v1910 = vunpack.c.l.bf16 %v1891
        %v1911 = vunpack.c.h.bf16 %v1891
        %v1912 = vunpack.c.l.bf16 %v1892
        %v1913 = vunpack.c.h.bf16 %v1892
        %v1914 = vunpack.c.l.bf16 %v1893
        %v1915 = vunpack.c.h.bf16 %v1893
        %v1916 = vunpack.c.l.bf16 %v1894
        %v1917 = vunpack.c.h.bf16 %v1894
        %v1918 = vunpack.c.l.bf16 %v1895
        %v1919 = vunpack.c.h.bf16 %v1895
        %v1920 = vunpack.c.l.bf16 %v1896
        %v1921 = vunpack.c.h.bf16 %v1896
        %v1922 = vunpack.c.l.bf16 %v1897
        %v1923 = vunpack.c.h.bf16 %v1897
        %v1924 = vunpack.c.l.bf16 %v1898
        %v1925 = vunpack.c.h.bf16 %v1898
        %v1926 = vunpack.c.l.bf16 %v1899
        %v1927 = vunpack.c.h.bf16 %v1899
        %v1928 = vunpack.c.l.bf16 %v1900
        %v1929 = vunpack.c.h.bf16 %v1900
        %v1930 = vunpack.c.l.bf16 %v1901
        %v1931 = vunpack.c.h.bf16 %v1901
        %v1932 = vunpack.c.l.bf16 %v1902
        %v1933 = vunpack.c.h.bf16 %v1902
        %v1934 = vunpack.c.l.bf16 %v1903
        %v1935 = vunpack.c.h.bf16 %v1903
        %v1936 = vunpack.c.l.bf16 %v1904
        %v1937 = vunpack.c.h.bf16 %v1904
        %1938 = vmatpush.xpose.msra.mxu0 %v1921
        %1939 = vmatpush.xpose.msra.mxu0 %v1920
        %1940 = vmatpush.xpose.msra.mxu0 %v1919
        %1941 = vmatpush.xpose.msra.mxu0 %v1918
        %1942 = vmatpush.xpose.msra.mxu0 %v1917
        %1943 = vmatpush.xpose.msra.mxu0 %v1916
        %1944 = vmatpush.xpose.msra.mxu0 %v1915
        %1945 = vmatpush.xpose.msra.mxu0 %v1914
        %1946 = vmatpush.xpose.msra.mxu0 %v1913
        %1947 = vmatpush.xpose.msra.mxu0 %v1912
        %1948 = vmatpush.xpose.msra.mxu0 %v1911
        %1949 = vmatpush.xpose.msra.mxu0 %v1910
        %1950 = vmatpush.xpose.msra.mxu0 %v1909
        %1951 = vmatpush.xpose.msra.mxu0 %v1908
        %1952 = vmatpush.xpose.msra.mxu0 %v1907
        %1953 = vmatpush.xpose.msra.mxu0 %v1906
        %1954 = vmatmul.f32.gmra.mxu0 %v1905
        %v1955 = vpop.f32.mrf.mxu0
        %v1956 = vadd.f32 0.0, %v1955
        %1957 = vdwg.mxu0
        %1958 = vmatpush.xpose.msra.mxu0 %v1937
        %1959 = vmatpush.xpose.msra.mxu0 %v1936
        %1960 = vmatpush.xpose.msra.mxu0 %v1935
        %1961 = vmatpush.xpose.msra.mxu0 %v1934
        %1962 = vmatpush.xpose.msra.mxu0 %v1933
        %1963 = vmatpush.xpose.msra.mxu0 %v1932
        %1964 = vmatpush.xpose.msra.mxu0 %v1931
        %1965 = vmatpush.xpose.msra.mxu0 %v1930
        %1966 = vmatpush.xpose.msra.mxu0 %v1929
        %1967 = vmatpush.xpose.msra.mxu0 %v1928
        %1968 = vmatpush.xpose.msra.mxu0 %v1927
        %1969 = vmatpush.xpose.msra.mxu0 %v1926
        %1970 = vmatpush.xpose.msra.mxu0 %v1925
        %1971 = vmatpush.xpose.msra.mxu0 %v1924
        %1972 = vmatpush.xpose.msra.mxu0 %v1923
        %1973 = vmatpush.xpose.msra.mxu0 %v1922
        %1974 = vmatmul.f32.gmra.mxu0 %v1905
        %v1975 = vpop.f32.mrf.mxu0
        %v1976 = vadd.f32 0.0, %v1975
        %1977 = vdwg.mxu0
        %v1978 = vld [vmem:[#allocation14 + $0x5] ss:$0 sm:$0xff]
        %1980 = vset.pattern.permute.xlu0 0
        %1981 = vperm.xlu0 %1980, %v1978
        %v1982 = vpop.permute.xlu0 %1981
        %v1984 = vadd.f32 %v1956, %v1982
        %v1985 = vadd.f32 %v1976, %v1982
        %v1986 = vxor.u32 %v1984, 2147483648
        %v1987 = vxor.u32 %v1985, 2147483648
        %v1988 = vmul.f32 %v1986, 1.442695
        %v1989 = vpow.pop %v1988
        %v1990 = vmul.f32 %v1987, 1.442695
        %v1991 = vpow.pop %v1990
        %v1992 = vadd.f32 %v1989, 1.0
        %v1993 = vadd.f32 %v1991, 1.0
        %v1994 = vrcp.pop %v1992
        %v1995 = vmul.f32 %v1992, %v1994
        %v1996 = vsub.f32 1.0, %v1995
        %v1997 = vmul.f32 %v1994, %v1996
        %v1998 = vadd.f32 %v1994, %v1997
        %vm1999 = vweird.f32 %v1992
        %vm2000 = vweird.f32 %v1994
        %vm2001 = vmor %vm1999, %vm2000
        %v2002 = vsel %vm2001, %v1994, %v1998
        %v2003 = vand.u32 2147483647, %v1992
        %vm2004 = vcmp.eq.f32.partialorder %v2003, 8.507059e+37
        %v2005 = vand.u32 %v1992, 2147483648
        %v2006 = vor.u32 1.1754944e-38, %v2005
        %v2007 = vsel %vm2004, %v2006, %v2002
        %v2008 = vmul.f32 1.0, %v2007
        %v2009 = vrcp.pop %v1993
        %v2010 = vmul.f32 %v1993, %v2009
        %v2011 = vsub.f32 1.0, %v2010
        %v2012 = vmul.f32 %v2009, %v2011
        %v2013 = vadd.f32 %v2009, %v2012
        %vm2014 = vweird.f32 %v1993
        %vm2015 = vweird.f32 %v2009
        %vm2016 = vmor %vm2014, %vm2015
        %v2017 = vsel %vm2016, %v2009, %v2013
        %v2018 = vand.u32 2147483647, %v1993
        %vm2019 = vcmp.eq.f32.partialorder %v2018, 8.507059e+37
        %v2020 = vand.u32 %v1993, 2147483648
        %v2021 = vor.u32 1.1754944e-38, %v2020
        %v2022 = vsel %vm2019, %v2021, %v2017
        %v2023 = vmul.f32 1.0, %v2022
        %v2026 = vrot.slane %v2023, 7
        %vm2027 = vcmask 1040384
        %v2028 = vsel %vm2027, %v2008, %v2026
        %v2030 = vlaneseq
        %vm2031 = vcmp.ge.s32.totalorder %v2030, 0
        %vm2032 = vcmp.lt.s32.totalorder %v2030, 256
        %vm2033 = vmand %vm2031, %vm2032
        %2034 = vst.msk [vmem:[%s437] sm:$0x3] %vm2033, %v2028
        %s2035 = sand.u32 %s210, 1
        %s2036 = scalar_lea.sflag [#allocation4], %s2035
        %s2037 = sand.u32 %s210, 1
        %s2038 = smul.addr %s2037, 2
        %s2039 = scalar_lea.vmem [#allocation16], %s2038
        // Predicated region
        $region85: #{tpu_custom_call.1} parent=51 // pred_check
          %p2040 = pneg %p220
        $region86: #{tpu_custom_call.1} parent=51 // pred_check_branch
          %2042 = sbr.rel (%p2040) target = $region88
        $region87: #{tpu_custom_call.1} parent=51 // pred_region
          %s2043 = smul.u32 2, %s29
          %2045 = vsyncadd %s2036, 0
          %s2046 = scalar_lea.hbm %s8, %s2043
          %s2048 = sshll.u32 %s2039, 4
          %s2049 = int_to_ptr.vmem [resolvable:$true] %s2048
          %s2050 = sshll.u32 %s2046, 4
          %s2051 = int_to_ptr.hbm [resolvable:$true] %s2050
          %2053 = dma.vmem_to_hbm [thread:$0]  %s2049, 32, %s2051, %s2036
        $region88: #{tpu_custom_call.1} parent=51 // pred_fallthru
          _
      $region52: #{tpu_custom_call.1} parent=5 // pred_fallthru
        _
      %p2054 = scmp.le.s32.totalorder 2, %s24
      // Predicated region
      $region89: #{tpu_custom_call.1} parent=5 // pred_check
        %p2055 = pneg %p2054
      $region90: #{tpu_custom_call.1} parent=5 // pred_check_branch
        %2057 = sbr.rel (%p2055) target = $region92
      $region91: #{tpu_custom_call.1} parent=5 // pred_region
        %s2058 = ssub.s32 %s24, 2
        // Predicated region
        $region93: #{tpu_custom_call.1} parent=91 // pred_check
          %p2059 = pneg %p226
        $region94: #{tpu_custom_call.1} parent=91 // pred_check_branch
          %2061 = sbr.rel (%p2059) target = $region96
        $region95: #{tpu_custom_call.1} parent=91 // pred_region
          %s2062 = sand.u32 %s211, 1
          %s2063 = scalar_lea.sflag [#allocation4], %s2062
          %s2064 = sand.u32 %s211, 1
          %s2065 = smul.addr %s2064, 2
          %s2066 = scalar_lea.vmem [#allocation16], %s2065
          %2068 = dma.done %s2063, 32
        $region96: #{tpu_custom_call.1} parent=91 // pred_fallthru
          _
      $region92: #{tpu_custom_call.1} parent=5 // pred_fallthru
        _
    $region6: #{tpu_custom_call.1} parent=1 // loop_footer
      %s28 = sadd.s32 1, %s24
    $region7: #{tpu_custom_call.1} parent=1 // loop_footer_branch
      %23 = sbr.rel target = $region3
    $region8: #{tpu_custom_call.1} parent=1 // loop_exit
      _
    %2069 = vsyncpa [#allocation3], 1
    %s2070 = scalar_lea.sflag [#allocation3], 1
    %2071 = vsyncpa %s2070, 1
    %2072 = vsyncpa [#allocation6], 1
    %2073 = vsyncpa [#allocation9], 1
    %2074 = vsyncpa [#allocation12], 1
    %2075 = vsyncpa [#allocation15], 1
    %2076 = vsyncpa [#allocation4], 1
    %s2077 = scalar_lea.sflag [#allocation4], 1
    %2078 = vsyncpa %s2077, 1

</llo_original>
